<compile_context>
chip_gen: v7x
topology: tpu7x:2x2x1
jax: 0.10.0
libtpu: 0.0.40
codegen_flags: <defaults>
</compile_context>

<pallas_src>
import functools

import jax
import jax.numpy as jnp
from jax import lax
from jax.experimental import pallas as pl
from jax.experimental.pallas import tpu as pltpu


def _round_up(x, m):
    return (x + m - 1) // m * m


def clip_head_kernel(scale_ref, img_ref, wimg_ref, txt_ref, probs_ref,
                     acc_ref, *, num_labels):
    k = pl.program_id(1)

    @pl.when(k == 0)
    def _():
        acc_ref[...] = jnp.zeros_like(acc_ref)

    # Projection matmul: bf16 operands streamed over K, f32 MXU accumulation.
    acc_ref[...] += jnp.dot(img_ref[...], wimg_ref[...],
                            preferred_element_type=jnp.float32)

    @pl.when(k == pl.num_programs(1) - 1)
    def _():
        img_emb = acc_ref[...]
        # L2-normalize image embeddings (CLIP: x / x.norm(dim=-1)).  The tiny
        # floor only affects all-zero padded batch rows (keeps them finite).
        sq = jnp.sum(img_emb * img_emb, axis=-1, keepdims=True)
        img_n = img_emb * lax.rsqrt(jnp.maximum(sq, 1e-30))

        # Text embeddings arrive pre-normalized, bf16 (batch-invariant,
        # hoisted).  Similarity on the fast bf16 MXU path (f32 accumulation);
        # contraction is last-dim vs last-dim so no transposed text block is
        # materialized.
        logits = scale_ref[0, 0] * lax.dot_general(
            img_n.astype(jnp.bfloat16), txt_ref[...],
            dimension_numbers=(((1,), (1,)), ((), ())),
            preferred_element_type=jnp.float32)

        # Mask padded label columns with -inf before the softmax over labels.
        col = lax.broadcasted_iota(jnp.int32, logits.shape, 1)
        logits = jnp.where(col < num_labels, logits, -jnp.inf)

        m = jnp.max(logits, axis=-1, keepdims=True)
        e = jnp.exp(logits - m)
        probs_ref[...] = e / jnp.sum(e, axis=-1, keepdims=True)


def clip_classifier_forward(images_nchw, w_img, txt_emb, logit_scale, *,
                            max_tile_b=256, max_tile_k=2048):
    """images_nchw: (B, C, H, W) f32; w_img: (C*H*W, D); txt_emb: (L, D);
    logit_scale: (1, 1) f32 (pre-exp, as stored by CLIP). Returns (B, L) probs."""
    B = images_nchw.shape[0]
    K, D = w_img.shape
    L = txt_emb.shape[0]

    # ---- tile selection (perf review) ----
    # tile_b: one batch tile when B is modest -> weights stream from HBM once;
    #         multiple of 16 (bf16 sublane packing), capped at 256.
    # tile_k: as large as practical (fewer grid steps, bigger weight DMAs);
    #         multiple of 256, capped at 2048.
    tile_b = min(max_tile_b, _round_up(B, 16))
    tile_k = min(max_tile_k, _round_up(K, 256))

    B_pad = _round_up(B, tile_b)
    K_pad = _round_up(K, tile_k)
    D_pad = _round_up(D, 256)      # 256-multiple: full MXU tile on v6e/v7x.
    L_pad = _round_up(L, 128)      # lane-dense output.

    # ---- plain-JAX glue: layout flatten, padding, hoisted preprocessing ----
    img_flat = images_nchw.reshape(B, -1)                    # (B, K) row-major

    img_p = jnp.zeros((B_pad, K_pad), jnp.bfloat16)
    img_p = img_p.at[:B, :K].set(img_flat.astype(jnp.bfloat16))
    w_p = jnp.zeros((K_pad, D_pad), jnp.bfloat16)
    w_p = w_p.at[:K, :D].set(w_img.astype(jnp.bfloat16))

    # Hoist batch-invariant text normalization; bf16 halves HBM/VMEM cost and
    # keeps the similarity matmul on the fast MXU path.
    txt = txt_emb.astype(jnp.float32)
    txt_n = txt / jnp.linalg.norm(txt, axis=-1, keepdims=True)
    txt_p = jnp.zeros((L_pad, D_pad), jnp.bfloat16)
    txt_p = txt_p.at[:L, :D].set(txt_n.astype(jnp.bfloat16))

    # Hoist exp(logit_scale) (scalar) as well; passed via SMEM.
    scale = jnp.exp(logit_scale.astype(jnp.float32)).reshape(1, 1)

    grid = (B_pad // tile_b, K_pad // tile_k)
    num_b_tiles = grid[0]

    # Weight matrix is read once per batch tile (advisory for XLA scheduling).
    cost = pl.CostEstimate(
        flops=2 * B_pad * K_pad * D_pad + 2 * B_pad * D_pad * L_pad,
        transcendentals=B_pad * L_pad + B_pad,
        bytes_accessed=(img_p.size * 2 + w_p.size * 2 * num_b_tiles
                        + txt_p.size * 2 + B_pad * L_pad * 4 + 4),
    )

    kernel = functools.partial(clip_head_kernel, num_labels=L)

    def build(single_buffer_txt):
        if single_buffer_txt:
            # Constant block (index_map always (0, 0)): double-buffering it
            # only burns VMEM, so request a single buffer.
            txt_spec = pl.BlockSpec((L_pad, D_pad), lambda b, k: (0, 0),
                                    pipeline_mode=pl.Buffered(1))
            txt_bufs = 1
        else:
            txt_spec = pl.BlockSpec((L_pad, D_pad), lambda b, k: (0, 0))
            txt_bufs = 2

        # Explicit VMEM budget; v7x-safe (<= 64 MiB physical), and above the
        # 16 MiB (v5e) / 32 MiB (v6e/v7x) scoped defaults for the large tiles.
        vmem_bytes = (2 * tile_b * tile_k * 2           # image pixel dbl buffer
                      + 2 * tile_k * D_pad * 2          # weight dbl buffer
                      + tile_b * D_pad * 4              # f32 accumulator
                      + txt_bufs * L_pad * D_pad * 2    # text block(s), bf16
                      + 2 * tile_b * L_pad * 4)         # output dbl buffer
        vmem_limit = min(64 << 20, max(32 << 20, int(vmem_bytes * 1.5)))

        return pl.pallas_call(
            kernel,
            out_shape=jax.ShapeDtypeStruct((B_pad, L_pad), jnp.float32),
            grid_spec=pltpu.PrefetchScalarGridSpec(
                num_scalar_prefetch=0,
                grid=grid,
                in_specs=[
                    pl.BlockSpec(memory_space=pltpu.MemorySpace.SMEM),    # exp(scale)
                    pl.BlockSpec((tile_b, tile_k), lambda b, k: (b, k)),  # image pixels
                    pl.BlockSpec((tile_k, D_pad), lambda b, k: (k, 0)),   # proj weights
                    txt_spec,                                             # text embeds
                ],
                out_specs=pl.BlockSpec((tile_b, L_pad), lambda b, k: (b, 0)),
                scratch_shapes=[pltpu.VMEM((tile_b, D_pad), jnp.float32)],
            ),
            compiler_params=pltpu.CompilerParams(
                dimension_semantics=("parallel", "arbitrary"),
                vmem_limit_bytes=vmem_limit),
            cost_estimate=cost,
        )

    try:
        probs_padded = build(single_buffer_txt=True)(scale, img_p, w_p, txt_p)
    except Exception:
        # Fallback for jax versions where single-buffering an invariant block
        # via pl.Buffered(1) is not supported.
        probs_padded = build(single_buffer_txt=False)(scale, img_p, w_p, txt_p)

    return probs_padded[:B, :L]


def _reference(images_nchw, w_img, txt_emb, logit_scale):
    """Pure-JAX reference matching the kernel's bf16 matmul inputs / f32 acc."""
    B = images_nchw.shape[0]
    img = jnp.dot(images_nchw.reshape(B, -1).astype(jnp.bfloat16),
                  w_img.astype(jnp.bfloat16),
                  preferred_element_type=jnp.float32)
    sq = jnp.sum(img * img, axis=-1, keepdims=True)
    img_n = img * lax.rsqrt(jnp.maximum(sq, 1e-30))
    txt = txt_emb.astype(jnp.float32)
    txt_n = txt / jnp.linalg.norm(txt, axis=-1, keepdims=True)
    logits = jnp.exp(logit_scale[0, 0]) * jnp.dot(
        img_n.astype(jnp.bfloat16), txt_n.astype(jnp.bfloat16).T,
        preferred_element_type=jnp.float32)
    return jax.nn.softmax(logits, axis=1)


if __name__ == "__main__":
    # Small synthetic shapes consistent with the forward:
    # batch=2 images (NCHW 3x16x16 -> K=768), 8 candidate labels, embed_dim=64.
    B, C, H, W = 2, 3, 16, 16
    L, D = 8, 64

    key = jax.random.PRNGKey(0)
    k_img, k_wimg, k_txt = jax.random.split(key, 3)

    images = jax.random.normal(k_img, (B, C, H, W), dtype=jnp.float32)
    w_img = jax.random.normal(k_wimg, (C * H * W, D), dtype=jnp.float32) * 0.02
    txt_emb = jax.random.normal(k_txt, (L, D), dtype=jnp.float32)
    # CLIP stores ln(1/0.07) and exponentiates at use -> scale ~= 14.29.
    logit_scale = jnp.full((1, 1), jnp.log(1.0 / 0.07), dtype=jnp.float32)

    probs = clip_classifier_forward(images, w_img, txt_emb, logit_scale)
    probs = jax.block_until_ready(probs)

    ref = _reference(images, w_img, txt_emb, logit_scale)
    assert probs.shape == (B, L)
    assert bool(jnp.all(jnp.isfinite(probs)))
    assert jnp.allclose(jnp.sum(probs, axis=1), 1.0, atol=1e-5)
    # bf16 matmul inputs (both paths identical); tolerance covers f32
    # accumulation-order differences amplified by exp(logit_scale)~14.3.
    assert jnp.allclose(probs, ref, atol=5e-3, rtol=5e-3)

    print("KERNEL_OK")
</pallas_src>

<mosaic_0001>
module attributes {stable_mosaic.version = 11 : i64} {
  func.func @clip_head_kernel(%arg0: i32, %arg1: i32, %arg2: memref<1x1xf32, #tpu.memory_space<smem>>, %arg3: memref<16x768xbf16, #tpu.memory_space<vmem>>, %arg4: memref<768x256xbf16, #tpu.memory_space<vmem>>, %arg5: memref<128x256xbf16, #tpu.memory_space<vmem>>, %arg6: memref<16x128xf32, #tpu.memory_space<vmem>>, %arg7: memref<16x256xf32, #tpu.memory_space<vmem>>) attributes {dimension_semantics = [#tpu.dimension_semantics<parallel>, #tpu.dimension_semantics<arbitrary>], iteration_bounds = array<i64: 1, 1>, scalar_prefetch = 0 : i64, scratch_operands = 1 : i64, tpu.core_type = #tpu.core_type<tc>, window_params = [{transform_indices = @transform_0, window_bounds = array<i64: 1, 1>}, {transform_indices = @transform_1, window_bounds = array<i64: 16, 768>}, {transform_indices = @transform_2, window_bounds = array<i64: 768, 256>}, {pipeline_mode = #tpu.pipeline_mode<synchronous>, transform_indices = @transform_3, window_bounds = array<i64: 128, 256>}, {transform_indices = @transform_4, window_bounds = array<i64: 16, 128>}]} {
    %c0_i32 = arith.constant 0 : i32
    %0 = arith.cmpi eq, %arg1, %c0_i32 : i32
    %1 = arith.extui %0 : i1 to i32
    %c0_i32_0 = arith.constant 0 : i32
    %2 = arith.cmpi ne, %1, %c0_i32_0 : i32
    scf.if %2 {
      %cst_10 = arith.constant 0.000000e+00 : f32
      %12 = vector.broadcast %cst_10 : f32 to vector<16x256xf32>
      %c0_11 = arith.constant 0 : index
      %c0_12 = arith.constant 0 : index
      %13 = vector.load %arg7[%c0_11, %c0_12] : memref<16x256xf32, #tpu.memory_space<vmem>>, vector<16x256xf32>
      tpu.vector_store %arg7[%c0_11, %c0_12], %12 {strides = array<i32>} : memref<16x256xf32, #tpu.memory_space<vmem>>, vector<16x256xf32>,
    } else {
    }
    %c0 = arith.constant 0 : index
    %c0_1 = arith.constant 0 : index
    %3 = vector.load %arg7[%c0, %c0_1] : memref<16x256xf32, #tpu.memory_space<vmem>>, vector<16x256xf32>
    %c0_2 = arith.constant 0 : index
    %c0_3 = arith.constant 0 : index
    %4 = vector.load %arg3[%c0_2, %c0_3] : memref<16x768xbf16, #tpu.memory_space<vmem>>, vector<16x768xbf16>
    %c0_4 = arith.constant 0 : index
    %c0_5 = arith.constant 0 : index
    %5 = vector.load %arg4[%c0_4, %c0_5] : memref<768x256xbf16, #tpu.memory_space<vmem>>, vector<768x256xbf16>
    %cst = arith.constant dense<0.000000e+00> : vector<16x256xf32>
    %6 = tpu.matmul %4, %5, %cst {dimension_numbers = #tpu.dot_dimension_numbers<[1], [0], [0], [1], [0, 0, 1, 1], [], []>} : vector<16x768xbf16>, vector<768x256xbf16>, vector<16x256xf32> -> vector<16x256xf32>
    %7 = arith.addf %3, %6 : vector<16x256xf32>
    %c0_6 = arith.constant 0 : index
    %c0_7 = arith.constant 0 : index
    %8 = vector.load %arg7[%c0_6, %c0_7] : memref<16x256xf32, #tpu.memory_space<vmem>>, vector<16x256xf32>
    tpu.vector_store %arg7[%c0_6, %c0_7], %7 {strides = array<i32>} : memref<16x256xf32, #tpu.memory_space<vmem>>, vector<16x256xf32>,
    %c0_i32_8 = arith.constant 0 : i32
    %9 = arith.cmpi eq, %arg1, %c0_i32_8 : i32
    %10 = arith.extui %9 : i1 to i32
    %c0_i32_9 = arith.constant 0 : i32
    %11 = arith.cmpi ne, %10, %c0_i32_9 : i32
    scf.if %11 {
      %c0_10 = arith.constant 0 : index
      %c0_11 = arith.constant 0 : index
      %12 = vector.load %arg7[%c0_10, %c0_11] : memref<16x256xf32, #tpu.memory_space<vmem>>, vector<16x256xf32>
      %13 = arith.mulf %12, %12 : vector<16x256xf32>
      %cst_12 = arith.constant dense<0.000000e+00> : vector<16xf32>
      %14 = vector.multi_reduction <add>, %13, %cst_12 [1] : vector<16x256xf32> to vector<16xf32>
      %15 = vector.shape_cast %14 : vector<16xf32> to vector<16x1xf32>
      %cst_13 = arith.constant 1.000000e-30 : f32
      %16 = vector.broadcast %cst_13 : f32 to vector<16x1xf32>
      %17 = arith.maximumf %15, %16 : vector<16x1xf32>
      %18 = math.rsqrt %17 : vector<16x1xf32>
      %19 = vector.broadcast %18 : vector<16x1xf32> to vector<16x256xf32>
      %20 = arith.mulf %12, %19 : vector<16x256xf32>
      %c0_14 = arith.constant 0 : index
      %c0_15 = arith.constant 0 : index
      %21 = memref.load %arg2[%c0_14, %c0_15] : memref<1x1xf32, #tpu.memory_space<smem>>
      %22 = arith.truncf %20 : vector<16x256xf32> to vector<16x256xbf16>
      %c0_16 = arith.constant 0 : index
      %c0_17 = arith.constant 0 : index
      %23 = vector.load %arg5[%c0_16, %c0_17] : memref<128x256xbf16, #tpu.memory_space<vmem>>, vector<128x256xbf16>
      %cst_18 = arith.constant dense<0.000000e+00> : vector<16x128xf32>
      %24 = tpu.matmul %22, %23, %cst_18 {dimension_numbers = #tpu.dot_dimension_numbers<[1], [1], [0], [0], [0, 0, 1, 0], [], []>} : vector<16x256xbf16>, vector<128x256xbf16>, vector<16x128xf32> -> vector<16x128xf32>
      %25 = vector.broadcast %21 : f32 to vector<16x128xf32>
      %26 = arith.mulf %25, %24 : vector<16x128xf32>
      %27 = tpu.iota {dimensions = array<i32: 1>} : vector<16x128xi32>
      %c8_i32 = arith.constant 8 : i32
      %28 = vector.broadcast %c8_i32 : i32 to vector<16x128xi32>
      %29 = arith.cmpi slt, %27, %28 : vector<16x128xi32>
      %cst_19 = arith.constant 0xFF800000 : f32
      %30 = vector.broadcast %cst_19 : f32 to vector<16x128xf32>
      %31 = arith.select %29, %26, %30 : vector<16x128xi1>, vector<16x128xf32>
      %cst_20 = arith.constant dense<0xFF800000> : vector<16xf32>
      %32 = vector.multi_reduction <maximumf>, %31, %cst_20 [1] : vector<16x128xf32> to vector<16xf32>
      %33 = vector.shape_cast %32 : vector<16xf32> to vector<16x1xf32>
      %34 = vector.broadcast %33 : vector<16x1xf32> to vector<16x128xf32>
      %35 = arith.subf %31, %34 : vector<16x128xf32>
      %36 = math.exp %35 : vector<16x128xf32>
      %cst_21 = arith.constant dense<0.000000e+00> : vector<16xf32>
      %37 = vector.multi_reduction <add>, %36, %cst_21 [1] : vector<16x128xf32> to vector<16xf32>
      %38 = vector.shape_cast %37 : vector<16xf32> to vector<16x1xf32>
      %39 = vector.broadcast %38 : vector<16x1xf32> to vector<16x128xf32>
      %40 = arith.divf %36, %39 : vector<16x128xf32>
      %c0_22 = arith.constant 0 : index
      %c0_23 = arith.constant 0 : index
      %41 = vector.load %arg6[%c0_22, %c0_23] : memref<16x128xf32, #tpu.memory_space<vmem>>, vector<16x128xf32>
      tpu.vector_store %arg6[%c0_22, %c0_23], %40 {strides = array<i32>} : memref<16x128xf32, #tpu.memory_space<vmem>>, vector<16x128xf32>,
    } else {
    }
    return
  }
  func.func @transform_0(%arg0: i32, %arg1: i32) -> (i32, i32) {
    %c0_i32 = arith.constant 0 : i32
    %c0_i32_0 = arith.constant 0 : i32
    %c0_i32_1 = arith.constant 0 : i32
    return %c0_i32, %c0_i32_0 : i32, i32
  }
  func.func @transform_1(%arg0: i32, %arg1: i32) -> (i32, i32) {
    %c0_i32 = arith.constant 0 : i32
    return %arg0, %arg1 : i32, i32
  }
  func.func @transform_2(%arg0: i32, %arg1: i32) -> (i32, i32) {
    %c0_i32 = arith.constant 0 : i32
    %c0_i32_0 = arith.constant 0 : i32
    return %arg1, %c0_i32 : i32, i32
  }
  func.func @transform_3(%arg0: i32, %arg1: i32) -> (i32, i32) {
    %c0_i32 = arith.constant 0 : i32
    %c0_i32_0 = arith.constant 0 : i32
    %c0_i32_1 = arith.constant 0 : i32
    return %c0_i32, %c0_i32_0 : i32, i32
  }
  func.func @transform_4(%arg0: i32, %arg1: i32) -> (i32, i32) {
    %c0_i32 = arith.constant 0 : i32
    %c0_i32_0 = arith.constant 0 : i32
    return %arg0, %c0_i32 : i32, i32
  }
}

module attributes {stable_mosaic.version = 11 : i64} {
  func.func @clip_head_kernel(%arg0: i32, %arg1: i32, %arg2: memref<1x1xf32, #tpu.memory_space<smem>>, %arg3: memref<16x768xbf16, #tpu.memory_space<vmem>>, %arg4: memref<768x256xbf16, #tpu.memory_space<vmem>>, %arg5: memref<128x256xbf16, #tpu.memory_space<vmem>>, %arg6: memref<16x128xf32, #tpu.memory_space<vmem>>, %arg7: memref<16x256xf32, #tpu.memory_space<vmem>>) attributes {dimension_semantics = [#tpu.dimension_semantics<parallel>, #tpu.dimension_semantics<arbitrary>], iteration_bounds = array<i64: 1, 1>, scalar_prefetch = 0 : i64, scratch_operands = 1 : i64, tpu.core_type = #tpu.core_type<tc>, window_params = [{transform_indices = @transform_0, window_bounds = array<i64: 1, 1>}, {transform_indices = @transform_1, window_bounds = array<i64: 16, 768>}, {transform_indices = @transform_2, window_bounds = array<i64: 768, 256>}, {pipeline_mode = #tpu.pipeline_mode<synchronous>, transform_indices = @transform_3, window_bounds = array<i64: 128, 256>}, {transform_indices = @transform_4, window_bounds = array<i64: 16, 128>}]} {
    %c0_i32 = arith.constant 0 : i32
    %0 = arith.cmpi eq, %arg1, %c0_i32 : i32
    %1 = arith.extui %0 : i1 to i32
    %c0_i32_0 = arith.constant 0 : i32
    %2 = arith.cmpi ne, %1, %c0_i32_0 : i32
    scf.if %2 {
      %cst_10 = arith.constant 0.000000e+00 : f32
      %12 = vector.broadcast %cst_10 : f32 to vector<16x256xf32>
      %c0_11 = arith.constant 0 : index
      %c0_12 = arith.constant 0 : index
      %13 = vector.load %arg7[%c0_11, %c0_12] : memref<16x256xf32, #tpu.memory_space<vmem>>, vector<16x256xf32>
      tpu.vector_store %arg7[%c0_11, %c0_12], %12 {strides = array<i32>} : memref<16x256xf32, #tpu.memory_space<vmem>>, vector<16x256xf32>,
    } else {
    }
    %c0 = arith.constant 0 : index
    %c0_1 = arith.constant 0 : index
    %3 = vector.load %arg7[%c0, %c0_1] : memref<16x256xf32, #tpu.memory_space<vmem>>, vector<16x256xf32>
    %c0_2 = arith.constant 0 : index
    %c0_3 = arith.constant 0 : index
    %4 = vector.load %arg3[%c0_2, %c0_3] : memref<16x768xbf16, #tpu.memory_space<vmem>>, vector<16x768xbf16>
    %c0_4 = arith.constant 0 : index
    %c0_5 = arith.constant 0 : index
    %5 = vector.load %arg4[%c0_4, %c0_5] : memref<768x256xbf16, #tpu.memory_space<vmem>>, vector<768x256xbf16>
    %cst = arith.constant dense<0.000000e+00> : vector<16x256xf32>
    %6 = tpu.matmul %4, %5, %cst {dimension_numbers = #tpu.dot_dimension_numbers<[1], [0], [0], [1], [0, 0, 1, 1], [], []>} : vector<16x768xbf16>, vector<768x256xbf16>, vector<16x256xf32> -> vector<16x256xf32>
    %7 = arith.addf %3, %6 : vector<16x256xf32>
    %c0_6 = arith.constant 0 : index
    %c0_7 = arith.constant 0 : index
    %8 = vector.load %arg7[%c0_6, %c0_7] : memref<16x256xf32, #tpu.memory_space<vmem>>, vector<16x256xf32>
    tpu.vector_store %arg7[%c0_6, %c0_7], %7 {strides = array<i32>} : memref<16x256xf32, #tpu.memory_space<vmem>>, vector<16x256xf32>,
    %c0_i32_8 = arith.constant 0 : i32
    %9 = arith.cmpi eq, %arg1, %c0_i32_8 : i32
    %10 = arith.extui %9 : i1 to i32
    %c0_i32_9 = arith.constant 0 : i32
    %11 = arith.cmpi ne, %10, %c0_i32_9 : i32
    scf.if %11 {
      %c0_10 = arith.constant 0 : index
      %c0_11 = arith.constant 0 : index
      %12 = vector.load %arg7[%c0_10, %c0_11] : memref<16x256xf32, #tpu.memory_space<vmem>>, vector<16x256xf32>
      %13 = arith.mulf %12, %12 : vector<16x256xf32>
      %cst_12 = arith.constant dense<0.000000e+00> : vector<16xf32>
      %14 = vector.multi_reduction <add>, %13, %cst_12 [1] : vector<16x256xf32> to vector<16xf32>
      %15 = vector.shape_cast %14 : vector<16xf32> to vector<16x1xf32>
      %cst_13 = arith.constant 1.000000e-30 : f32
      %16 = vector.broadcast %cst_13 : f32 to vector<16x1xf32>
      %17 = arith.maximumf %15, %16 : vector<16x1xf32>
      %18 = math.rsqrt %17 : vector<16x1xf32>
      %19 = vector.broadcast %18 : vector<16x1xf32> to vector<16x256xf32>
      %20 = arith.mulf %12, %19 : vector<16x256xf32>
      %c0_14 = arith.constant 0 : index
      %c0_15 = arith.constant 0 : index
      %21 = memref.load %arg2[%c0_14, %c0_15] : memref<1x1xf32, #tpu.memory_space<smem>>
      %22 = arith.truncf %20 : vector<16x256xf32> to vector<16x256xbf16>
      %c0_16 = arith.constant 0 : index
      %c0_17 = arith.constant 0 : index
      %23 = vector.load %arg5[%c0_16, %c0_17] : memref<128x256xbf16, #tpu.memory_space<vmem>>, vector<128x256xbf16>
      %cst_18 = arith.constant dense<0.000000e+00> : vector<16x128xf32>
      %24 = tpu.matmul %22, %23, %cst_18 {dimension_numbers = #tpu.dot_dimension_numbers<[1], [1], [0], [0], [0, 0, 1, 0], [], []>} : vector<16x256xbf16>, vector<128x256xbf16>, vector<16x128xf32> -> vector<16x128xf32>
      %25 = vector.broadcast %21 : f32 to vector<16x128xf32>
      %26 = arith.mulf %25, %24 : vector<16x128xf32>
      %27 = tpu.iota {dimensions = array<i32: 1>} : vector<16x128xi32>
      %c8_i32 = arith.constant 8 : i32
      %28 = vector.broadcast %c8_i32 : i32 to vector<16x128xi32>
      %29 = arith.cmpi slt, %27, %28 : vector<16x128xi32>
      %cst_19 = arith.constant 0xFF800000 : f32
      %30 = vector.broadcast %cst_19 : f32 to vector<16x128xf32>
      %31 = arith.select %29, %26, %30 : vector<16x128xi1>, vector<16x128xf32>
      %cst_20 = arith.constant dense<0xFF800000> : vector<16xf32>
      %32 = vector.multi_reduction <maximumf>, %31, %cst_20 [1] : vector<16x128xf32> to vector<16xf32>
      %33 = vector.shape_cast %32 : vector<16xf32> to vector<16x1xf32>
      %34 = vector.broadcast %33 : vector<16x1xf32> to vector<16x128xf32>
      %35 = arith.subf %31, %34 : vector<16x128xf32>
      %36 = math.exp %35 : vector<16x128xf32>
      %cst_21 = arith.constant dense<0.000000e+00> : vector<16xf32>
      %37 = vector.multi_reduction <add>, %36, %cst_21 [1] : vector<16x128xf32> to vector<16xf32>
      %38 = vector.shape_cast %37 : vector<16xf32> to vector<16x1xf32>
      %39 = vector.broadcast %38 : vector<16x1xf32> to vector<16x128xf32>
      %40 = arith.divf %36, %39 : vector<16x128xf32>
      %c0_22 = arith.constant 0 : index
      %c0_23 = arith.constant 0 : index
      %41 = vector.load %arg6[%c0_22, %c0_23] : memref<16x128xf32, #tpu.memory_space<vmem>>, vector<16x128xf32>
      tpu.vector_store %arg6[%c0_22, %c0_23], %40 {strides = array<i32>} : memref<16x128xf32, #tpu.memory_space<vmem>>, vector<16x128xf32>,
    } else {
    }
    return
  }
  func.func @transform_0(%arg0: i32, %arg1: i32) -> (i32, i32) {
    %c0_i32 = arith.constant 0 : i32
    %c0_i32_0 = arith.constant 0 : i32
    %c0_i32_1 = arith.constant 0 : i32
    return %c0_i32, %c0_i32_0 : i32, i32
  }
  func.func @transform_1(%arg0: i32, %arg1: i32) -> (i32, i32) {
    %c0_i32 = arith.constant 0 : i32
    return %arg0, %arg1 : i32, i32
  }
  func.func @transform_2(%arg0: i32, %arg1: i32) -> (i32, i32) {
    %c0_i32 = arith.constant 0 : i32
    %c0_i32_0 = arith.constant 0 : i32
    return %arg1, %c0_i32 : i32, i32
  }
  func.func @transform_3(%arg0: i32, %arg1: i32) -> (i32, i32) {
    %c0_i32 = arith.constant 0 : i32
    %c0_i32_0 = arith.constant 0 : i32
    %c0_i32_1 = arith.constant 0 : i32
    return %c0_i32, %c0_i32_0 : i32, i32
  }
  func.func @transform_4(%arg0: i32, %arg1: i32) -> (i32, i32) {
    %c0_i32 = arith.constant 0 : i32
    %c0_i32_0 = arith.constant 0 : i32
    return %arg0, %c0_i32 : i32, i32
  }
}

</mosaic_0001>

<llo_original>
// kernel: tpu_custom_call.1
$region0: #{tpu_custom_call.1}
  #allocation0 [shape = 'u32[]', space=smem, size = 0x4, offset = 0x4, fixed_abs, tag = 'smem constant byte address 0x4 - core index']
  #allocation1 [shape = 'u32[144,128]{1,0:T(1,128)}', space=vmem, size = 0x12000, scoped, tag = 'internal scratch']
  #allocation2 [shape = 'f32[16,256]{1,0:T(8,128)}', space=vmem, size = 0x4000, scoped, tag = 'scratch operand']
  #allocation3 [shape = 'f32[1,1]{1,0:T(1,128)S(6)}', space=smem, size = 0x200, scoped, tag = 'scoped memory for tpu_custom_call.1']
  %s0 = inlined_call_operand.<no memory space> [shape: f32[1,1], index: 0, kind: input, shape index: {}]
  %s1 = inlined_call_operand.hbm [shape: bf16[16,768], index: 1, kind: input, shape index: {}]
  %s2 = inlined_call_operand.hbm [shape: bf16[768,256], index: 2, kind: input, shape index: {}]
  %s3 = inlined_call_operand.hbm [shape: bf16[128,256], index: 3, kind: input, shape index: {}]
  %s4 = inlined_call_operand.hbm [shape: f32[16,128], index: 4, kind: output, shape index: {}]
  %s5 = sld [smem:[#allocation0]]
  $region46: #{tpu_custom_call.1} parent=0
    _
  %s7 = ssub.s32 1, %s5
  %s8 = scalar_select 0, %s7, %s5
  %9 = sst [smem:[#allocation3]] %s0
  $region1: #{tpu_custom_call.1} parent=0
    #allocation4 [shape = 'u8[24576]{0}', space=vmem, size = 0x6000, scoped, tag = 'input window, operand 1, single buffered']
    #allocation5 [shape = 's32[1]{0}', space=sflag, size = 0x4, scoped, tag = 'scoped memory for tpu_custom_call.1']
    #allocation6 [shape = 's32[1]{0}', space=sflag, size = 0x4, scoped, tag = 'scoped memory for tpu_custom_call.1']
    #allocation7 [shape = 'u8[393216]{0}', space=vmem, size = 0x60000, scoped, tag = 'input window, operand 2, single buffered']
    #allocation8 [shape = 's32[1]{0}', space=sflag, size = 0x4, scoped, tag = 'scoped memory for tpu_custom_call.1']
    #allocation9 [shape = 'u8[65536]{0}', space=vmem, size = 0x10000, scoped, tag = 'input window, operand 3, single buffered']
    #allocation10 [shape = 'u8[8192]{0}', space=vmem, size = 0x2000, scoped, tag = 'output window, operand 0, single buffered']
    %10 = vsyncpa [#allocation5], 0
    %11 = vsyncpa [#allocation8], 0
    %12 = vsyncpa [#allocation6], 0
    // Predicated region
    $region2: #{tpu_custom_call.1} parent=1 // pred_check
      _
    $region3: #{tpu_custom_call.1} parent=1 // pred_check_branch
      %14 = sbr.rel (0) target = $region5
    $region4: #{tpu_custom_call.1} parent=1 // pred_region
      _
    $region5: #{tpu_custom_call.1} parent=1 // pred_fallthru
      _
    // Predicated region
    $region6: #{tpu_custom_call.1} parent=1 // pred_check
      _
    $region7: #{tpu_custom_call.1} parent=1 // pred_check_branch
      %16 = sbr.rel (0) target = $region9
    $region8: #{tpu_custom_call.1} parent=1 // pred_region
      %s18 = ssub.s32 768, 768
      %19 = vsyncadd [#allocation5], %s18
      %s20 = sshll.u32 [#allocation4], 4
      %s21 = int_to_ptr.vmem [resolvable:$true] %s20
      %26 = dma.hbm_to_vmem [thread:$0]  %s1, 768, %s21, [#allocation5], 384, 384, 24
    $region9: #{tpu_custom_call.1} parent=1 // pred_fallthru
      _
    // Predicated region
    $region10: #{tpu_custom_call.1} parent=1 // pred_check
      _
    $region11: #{tpu_custom_call.1} parent=1 // pred_check_branch
      %28 = sbr.rel (0) target = $region13
    $region12: #{tpu_custom_call.1} parent=1 // pred_region
      %s30 = ssub.s32 12288, 12288
      %31 = vsyncadd [#allocation8], %s30
      %s32 = sshll.u32 [#allocation7], 4
      %s33 = int_to_ptr.vmem [resolvable:$true] %s32
      %38 = dma.hbm_to_vmem [thread:$0]  %s2, 12288, %s33, [#allocation8], 128, 128, 8
    $region13: #{tpu_custom_call.1} parent=1 // pred_fallthru
      _
    // Predicated region
    $region14: #{tpu_custom_call.1} parent=1 // pred_check
      _
    $region15: #{tpu_custom_call.1} parent=1 // pred_check_branch
      %40 = sbr.rel (0) target = $region17
    $region16: #{tpu_custom_call.1} parent=1 // pred_region
      %s42 = ssub.s32 2048, 2048
      %43 = vsyncadd [#allocation8], %s42
      %s44 = sshll.u32 [#allocation9], 4
      %s45 = int_to_ptr.vmem [resolvable:$true] %s44
      %50 = dma.hbm_to_vmem [thread:$0]  %s3, 2048, %s45, [#allocation8], 128, 128, 8
    $region17: #{tpu_custom_call.1} parent=1 // pred_fallthru
      _
    // Predicated region
    $region18: #{tpu_custom_call.1} parent=1 // pred_check
      _
    $region19: #{tpu_custom_call.1} parent=1 // pred_check_branch
      %52 = sbr.rel (0) target = $region21
    $region20: #{tpu_custom_call.1} parent=1 // pred_region
      %53 = dma.done [#allocation5], 768
    $region21: #{tpu_custom_call.1} parent=1 // pred_fallthru
      _
    // Predicated region
    $region22: #{tpu_custom_call.1} parent=1 // pred_check
      _
    $region23: #{tpu_custom_call.1} parent=1 // pred_check_branch
      %55 = sbr.rel (0) target = $region25
    $region24: #{tpu_custom_call.1} parent=1 // pred_region
      %56 = dma.done [#allocation8], 12288
    $region25: #{tpu_custom_call.1} parent=1 // pred_fallthru
      _
    // Predicated region
    $region26: #{tpu_custom_call.1} parent=1 // pred_check
      _
    $region27: #{tpu_custom_call.1} parent=1 // pred_check_branch
      %58 = sbr.rel (0) target = $region29
    $region28: #{tpu_custom_call.1} parent=1 // pred_region
      %59 = dma.done [#allocation8], 2048
    $region29: #{tpu_custom_call.1} parent=1 // pred_fallthru
      _
    %p61 = scmp.eq.s32.totalorder 0, 0
    // Predicated region
    $region30: #{tpu_custom_call.1} parent=1 // pred_check
      %p62 = pneg %p61
    $region31: #{tpu_custom_call.1} parent=1 // pred_check_branch
      %64 = sbr.rel (%p62) target = $region33
    $region32: #{tpu_custom_call.1} parent=1 // pred_region
      %65 = vst [vmem:[#allocation2] sm:$0xff] 0.0
      %66 = vst [vmem:[#allocation2 + $0x8] sm:$0xff] 0.0
      %67 = vst [vmem:[#allocation2 + $0x10] sm:$0xff] 0.0
      %68 = vst [vmem:[#allocation2 + $0x18] sm:$0xff] 0.0
    $region33: #{tpu_custom_call.1} parent=1 // pred_fallthru
      _
    %v69 = vld [vmem:[#allocation2] sm:$0xff]
    %v70 = vld [vmem:[#allocation2 + $0x8] sm:$0xff]
    %v71 = vld [vmem:[#allocation2 + $0x10] sm:$0xff]
    %v72 = vld [vmem:[#allocation2 + $0x18] sm:$0xff]
    %v73 = vld [vmem:[#allocation4] sm:$0xff]
    %v74 = vld [vmem:[#allocation4 + $0x8] sm:$0xff]
    %v75 = vld [vmem:[#allocation4 + $0x10] sm:$0xff]
    %v76 = vld [vmem:[#allocation4 + $0x18] sm:$0xff]
    %v77 = vld [vmem:[#allocation4 + $0x20] sm:$0xff]
    %v78 = vld [vmem:[#allocation4 + $0x28] sm:$0xff]
    %v79 = vld [vmem:[#allocation7] sm:$0xff]
    %v80 = vld [vmem:[#allocation7 + $0x8] sm:$0xff]
    %v81 = vld [vmem:[#allocation7 + $0x10] sm:$0xff]
    %v82 = vld [vmem:[#allocation7 + $0x18] sm:$0xff]
    %v83 = vld [vmem:[#allocation7 + $0x20] sm:$0xff]
    %v84 = vld [vmem:[#allocation7 + $0x28] sm:$0xff]
    %v85 = vld [vmem:[#allocation7 + $0x30] sm:$0xff]
    %v86 = vld [vmem:[#allocation7 + $0x38] sm:$0xff]
    %v87 = vld [vmem:[#allocation7 + $0x40] sm:$0xff]
    %v88 = vld [vmem:[#allocation7 + $0x48] sm:$0xff]
    %v89 = vld [vmem:[#allocation7 + $0x50] sm:$0xff]
    %v90 = vld [vmem:[#allocation7 + $0x58] sm:$0xff]
    %v91 = vld [vmem:[#allocation7 + $0x60] sm:$0xff]
    %v92 = vld [vmem:[#allocation7 + $0x68] sm:$0xff]
    %v93 = vld [vmem:[#allocation7 + $0x70] sm:$0xff]
    %v94 = vld [vmem:[#allocation7 + $0x78] sm:$0xff]
    %v95 = vld [vmem:[#allocation7 + $0x80] sm:$0xff]
    %v96 = vld [vmem:[#allocation7 + $0x88] sm:$0xff]
    %v97 = vld [vmem:[#allocation7 + $0x90] sm:$0xff]
    %v98 = vld [vmem:[#allocation7 + $0x98] sm:$0xff]
    %v99 = vld [vmem:[#allocation7 + $0xa0] sm:$0xff]
    %v100 = vld [vmem:[#allocation7 + $0xa8] sm:$0xff]
    %v101 = vld [vmem:[#allocation7 + $0xb0] sm:$0xff]
    %v102 = vld [vmem:[#allocation7 + $0xb8] sm:$0xff]
    %v103 = vld [vmem:[#allocation7 + $0xc0] sm:$0xff]
    %v104 = vld [vmem:[#allocation7 + $0xc8] sm:$0xff]
    %v105 = vld [vmem:[#allocation7 + $0xd0] sm:$0xff]
    %v106 = vld [vmem:[#allocation7 + $0xd8] sm:$0xff]
    %v107 = vld [vmem:[#allocation7 + $0xe0] sm:$0xff]
    %v108 = vld [vmem:[#allocation7 + $0xe8] sm:$0xff]
    %v109 = vld [vmem:[#allocation7 + $0xf0] sm:$0xff]
    %v110 = vld [vmem:[#allocation7 + $0xf8] sm:$0xff]
    %v111 = vld [vmem:[#allocation7 + $0x100] sm:$0xff]
    %v112 = vld [vmem:[#allocation7 + $0x108] sm:$0xff]
    %v113 = vld [vmem:[#allocation7 + $0x110] sm:$0xff]
    %v114 = vld [vmem:[#allocation7 + $0x118] sm:$0xff]
    %v115 = vld [vmem:[#allocation7 + $0x120] sm:$0xff]
    %v116 = vld [vmem:[#allocation7 + $0x128] sm:$0xff]
    %v117 = vld [vmem:[#allocation7 + $0x130] sm:$0xff]
    %v118 = vld [vmem:[#allocation7 + $0x138] sm:$0xff]
    %v119 = vld [vmem:[#allocation7 + $0x140] sm:$0xff]
    %v120 = vld [vmem:[#allocation7 + $0x148] sm:$0xff]
    %v121 = vld [vmem:[#allocation7 + $0x150] sm:$0xff]
    %v122 = vld [vmem:[#allocation7 + $0x158] sm:$0xff]
    %v123 = vld [vmem:[#allocation7 + $0x160] sm:$0xff]
    %v124 = vld [vmem:[#allocation7 + $0x168] sm:$0xff]
    %v125 = vld [vmem:[#allocation7 + $0x170] sm:$0xff]
    %v126 = vld [vmem:[#allocation7 + $0x178] sm:$0xff]
    %v127 = vld [vmem:[#allocation7 + $0x180] sm:$0xff]
    %v128 = vld [vmem:[#allocation7 + $0x188] sm:$0xff]
    %v129 = vld [vmem:[#allocation7 + $0x190] sm:$0xff]
    %v130 = vld [vmem:[#allocation7 + $0x198] sm:$0xff]
    %v131 = vld [vmem:[#allocation7 + $0x1a0] sm:$0xff]
    %v132 = vld [vmem:[#allocation7 + $0x1a8] sm:$0xff]
    %v133 = vld [vmem:[#allocation7 + $0x1b0] sm:$0xff]
    %v134 = vld [vmem:[#allocation7 + $0x1b8] sm:$0xff]
    %v135 = vld [vmem:[#allocation7 + $0x1c0] sm:$0xff]
    %v136 = vld [vmem:[#allocation7 + $0x1c8] sm:$0xff]
    %v137 = vld [vmem:[#allocation7 + $0x1d0] sm:$0xff]
    %v138 = vld [vmem:[#allocation7 + $0x1d8] sm:$0xff]
    %v139 = vld [vmem:[#allocation7 + $0x1e0] sm:$0xff]
    %v140 = vld [vmem:[#allocation7 + $0x1e8] sm:$0xff]
    %v141 = vld [vmem:[#allocation7 + $0x1f0] sm:$0xff]
    %v142 = vld [vmem:[#allocation7 + $0x1f8] sm:$0xff]
    %v143 = vld [vmem:[#allocation7 + $0x200] sm:$0xff]
    %v144 = vld [vmem:[#allocation7 + $0x208] sm:$0xff]
    %v145 = vld [vmem:[#allocation7 + $0x210] sm:$0xff]
    %v146 = vld [vmem:[#allocation7 + $0x218] sm:$0xff]
    %v147 = vld [vmem:[#allocation7 + $0x220] sm:$0xff]
    %v148 = vld [vmem:[#allocation7 + $0x228] sm:$0xff]
    %v149 = vld [vmem:[#allocation7 + $0x230] sm:$0xff]
    %v150 = vld [vmem:[#allocation7 + $0x238] sm:$0xff]
    %v151 = vld [vmem:[#allocation7 + $0x240] sm:$0xff]
    %v152 = vld [vmem:[#allocation7 + $0x248] sm:$0xff]
    %v153 = vld [vmem:[#allocation7 + $0x250] sm:$0xff]
    %v154 = vld [vmem:[#allocation7 + $0x258] sm:$0xff]
    %v155 = vld [vmem:[#allocation7 + $0x260] sm:$0xff]
    %v156 = vld [vmem:[#allocation7 + $0x268] sm:$0xff]
    %v157 = vld [vmem:[#allocation7 + $0x270] sm:$0xff]
    %v158 = vld [vmem:[#allocation7 + $0x278] sm:$0xff]
    %v159 = vld [vmem:[#allocation7 + $0x280] sm:$0xff]
    %v160 = vld [vmem:[#allocation7 + $0x288] sm:$0xff]
    %v161 = vld [vmem:[#allocation7 + $0x290] sm:$0xff]
    %v162 = vld [vmem:[#allocation7 + $0x298] sm:$0xff]
    %v163 = vld [vmem:[#allocation7 + $0x2a0] sm:$0xff]
    %v164 = vld [vmem:[#allocation7 + $0x2a8] sm:$0xff]
    %v165 = vld [vmem:[#allocation7 + $0x2b0] sm:$0xff]
    %v166 = vld [vmem:[#allocation7 + $0x2b8] sm:$0xff]
    %v167 = vld [vmem:[#allocation7 + $0x2c0] sm:$0xff]
    %v168 = vld [vmem:[#allocation7 + $0x2c8] sm:$0xff]
    %v169 = vld [vmem:[#allocation7 + $0x2d0] sm:$0xff]
    %v170 = vld [vmem:[#allocation7 + $0x2d8] sm:$0xff]
    %v171 = vld [vmem:[#allocation7 + $0x2e0] sm:$0xff]
    %v172 = vld [vmem:[#allocation7 + $0x2e8] sm:$0xff]
    %v173 = vld [vmem:[#allocation7 + $0x2f0] sm:$0xff]
    %v174 = vld [vmem:[#allocation7 + $0x2f8] sm:$0xff]
    %v181 = vunpack.c.l.b16 %v73
    %v182 = vunpack.c.h.b16 %v73
    %v183 = vunpack.c.l.b16 %v74
    %v184 = vunpack.c.h.b16 %v74
    %v185 = vunpack.c.l.b16 %v75
    %v186 = vunpack.c.h.b16 %v75
    %v187 = vunpack.c.l.b16 %v76
    %v188 = vunpack.c.h.b16 %v76
    %v189 = vunpack.c.l.b16 %v77
    %v190 = vunpack.c.h.b16 %v77
    %v191 = vunpack.c.l.b16 %v78
    %v192 = vunpack.c.h.b16 %v78
    %v193 = vpack.c.b16 %v187, %v181
    %v194 = vpack.c.b16 %v188, %v182
    %v195 = vpack.c.b16 %v189, %v183
    %v196 = vpack.c.b16 %v190, %v184
    %v197 = vpack.c.b16 %v191, %v185
    %v198 = vpack.c.b16 %v192, %v186
    %v301 = vunpack.c.l.b16 %v79
    %v302 = vunpack.c.h.b16 %v79
    %v303 = vunpack.c.l.b16 %v80
    %v304 = vunpack.c.h.b16 %v80
    %v305 = vunpack.c.l.b16 %v81
    %v306 = vunpack.c.h.b16 %v81
    %v307 = vunpack.c.l.b16 %v82
    %v308 = vunpack.c.h.b16 %v82
    %v309 = vunpack.c.l.b16 %v83
    %v310 = vunpack.c.h.b16 %v83
    %v311 = vunpack.c.l.b16 %v84
    %v312 = vunpack.c.h.b16 %v84
    %v313 = vunpack.c.l.b16 %v85
    %v314 = vunpack.c.h.b16 %v85
    %v315 = vunpack.c.l.b16 %v86
    %v316 = vunpack.c.h.b16 %v86
    %v317 = vunpack.c.l.b16 %v87
    %v318 = vunpack.c.h.b16 %v87
    %v319 = vunpack.c.l.b16 %v88
    %v320 = vunpack.c.h.b16 %v88
    %v321 = vunpack.c.l.b16 %v89
    %v322 = vunpack.c.h.b16 %v89
    %v323 = vunpack.c.l.b16 %v90
    %v324 = vunpack.c.h.b16 %v90
    %v325 = vunpack.c.l.b16 %v91
    %v326 = vunpack.c.h.b16 %v91
    %v327 = vunpack.c.l.b16 %v92
    %v328 = vunpack.c.h.b16 %v92
    %v329 = vunpack.c.l.b16 %v93
    %v330 = vunpack.c.h.b16 %v93
    %v331 = vunpack.c.l.b16 %v94
    %v332 = vunpack.c.h.b16 %v94
    %v333 = vunpack.c.l.b16 %v95
    %v334 = vunpack.c.h.b16 %v95
    %v335 = vunpack.c.l.b16 %v96
    %v336 = vunpack.c.h.b16 %v96
    %v337 = vunpack.c.l.b16 %v97
    %v338 = vunpack.c.h.b16 %v97
    %v339 = vunpack.c.l.b16 %v98
    %v340 = vunpack.c.h.b16 %v98
    %v341 = vunpack.c.l.b16 %v99
    %v342 = vunpack.c.h.b16 %v99
    %v343 = vunpack.c.l.b16 %v100
    %v344 = vunpack.c.h.b16 %v100
    %v345 = vunpack.c.l.b16 %v101
    %v346 = vunpack.c.h.b16 %v101
    %v347 = vunpack.c.l.b16 %v102
    %v348 = vunpack.c.h.b16 %v102
    %v349 = vunpack.c.l.b16 %v103
    %v350 = vunpack.c.h.b16 %v103
    %v351 = vunpack.c.l.b16 %v104
    %v352 = vunpack.c.h.b16 %v104
    %v353 = vunpack.c.l.b16 %v105
    %v354 = vunpack.c.h.b16 %v105
    %v355 = vunpack.c.l.b16 %v106
    %v356 = vunpack.c.h.b16 %v106
    %v357 = vunpack.c.l.b16 %v107
    %v358 = vunpack.c.h.b16 %v107
    %v359 = vunpack.c.l.b16 %v108
    %v360 = vunpack.c.h.b16 %v108
    %v361 = vunpack.c.l.b16 %v109
    %v362 = vunpack.c.h.b16 %v109
    %v363 = vunpack.c.l.b16 %v110
    %v364 = vunpack.c.h.b16 %v110
    %v365 = vunpack.c.l.b16 %v111
    %v366 = vunpack.c.h.b16 %v111
    %v367 = vunpack.c.l.b16 %v112
    %v368 = vunpack.c.h.b16 %v112
    %v369 = vunpack.c.l.b16 %v113
    %v370 = vunpack.c.h.b16 %v113
    %v371 = vunpack.c.l.b16 %v114
    %v372 = vunpack.c.h.b16 %v114
    %v373 = vunpack.c.l.b16 %v115
    %v374 = vunpack.c.h.b16 %v115
    %v375 = vunpack.c.l.b16 %v116
    %v376 = vunpack.c.h.b16 %v116
    %v377 = vunpack.c.l.b16 %v117
    %v378 = vunpack.c.h.b16 %v117
    %v379 = vunpack.c.l.b16 %v118
    %v380 = vunpack.c.h.b16 %v118
    %v381 = vunpack.c.l.b16 %v119
    %v382 = vunpack.c.h.b16 %v119
    %v383 = vunpack.c.l.b16 %v120
    %v384 = vunpack.c.h.b16 %v120
    %v385 = vunpack.c.l.b16 %v121
    %v386 = vunpack.c.h.b16 %v121
    %v387 = vunpack.c.l.b16 %v122
    %v388 = vunpack.c.h.b16 %v122
    %v389 = vunpack.c.l.b16 %v123
    %v390 = vunpack.c.h.b16 %v123
    %v391 = vunpack.c.l.b16 %v124
    %v392 = vunpack.c.h.b16 %v124
    %v393 = vunpack.c.l.b16 %v125
    %v394 = vunpack.c.h.b16 %v125
    %v395 = vunpack.c.l.b16 %v126
    %v396 = vunpack.c.h.b16 %v126
    %v397 = vunpack.c.l.b16 %v127
    %v398 = vunpack.c.h.b16 %v127
    %v399 = vunpack.c.l.b16 %v128
    %v400 = vunpack.c.h.b16 %v128
    %v401 = vunpack.c.l.b16 %v129
    %v402 = vunpack.c.h.b16 %v129
    %v403 = vunpack.c.l.b16 %v130
    %v404 = vunpack.c.h.b16 %v130
    %v405 = vunpack.c.l.b16 %v131
    %v406 = vunpack.c.h.b16 %v131
    %v407 = vunpack.c.l.b16 %v132
    %v408 = vunpack.c.h.b16 %v132
    %v409 = vunpack.c.l.b16 %v133
    %v410 = vunpack.c.h.b16 %v133
    %v411 = vunpack.c.l.b16 %v134
    %v412 = vunpack.c.h.b16 %v134
    %v413 = vunpack.c.l.b16 %v135
    %v414 = vunpack.c.h.b16 %v135
    %v415 = vunpack.c.l.b16 %v136
    %v416 = vunpack.c.h.b16 %v136
    %v417 = vunpack.c.l.b16 %v137
    %v418 = vunpack.c.h.b16 %v137
    %v419 = vunpack.c.l.b16 %v138
    %v420 = vunpack.c.h.b16 %v138
    %v421 = vunpack.c.l.b16 %v139
    %v422 = vunpack.c.h.b16 %v139
    %v423 = vunpack.c.l.b16 %v140
    %v424 = vunpack.c.h.b16 %v140
    %v425 = vunpack.c.l.b16 %v141
    %v426 = vunpack.c.h.b16 %v141
    %v427 = vunpack.c.l.b16 %v142
    %v428 = vunpack.c.h.b16 %v142
    %v429 = vunpack.c.l.b16 %v143
    %v430 = vunpack.c.h.b16 %v143
    %v431 = vunpack.c.l.b16 %v144
    %v432 = vunpack.c.h.b16 %v144
    %v433 = vunpack.c.l.b16 %v145
    %v434 = vunpack.c.h.b16 %v145
    %v435 = vunpack.c.l.b16 %v146
    %v436 = vunpack.c.h.b16 %v146
    %v437 = vunpack.c.l.b16 %v147
    %v438 = vunpack.c.h.b16 %v147
    %v439 = vunpack.c.l.b16 %v148
    %v440 = vunpack.c.h.b16 %v148
    %v441 = vunpack.c.l.b16 %v149
    %v442 = vunpack.c.h.b16 %v149
    %v443 = vunpack.c.l.b16 %v150
    %v444 = vunpack.c.h.b16 %v150
    %v445 = vunpack.c.l.b16 %v151
    %v446 = vunpack.c.h.b16 %v151
    %v447 = vunpack.c.l.b16 %v152
    %v448 = vunpack.c.h.b16 %v152
    %v449 = vunpack.c.l.b16 %v153
    %v450 = vunpack.c.h.b16 %v153
    %v451 = vunpack.c.l.b16 %v154
    %v452 = vunpack.c.h.b16 %v154
    %v453 = vunpack.c.l.b16 %v155
    %v454 = vunpack.c.h.b16 %v155
    %v455 = vunpack.c.l.b16 %v156
    %v456 = vunpack.c.h.b16 %v156
    %v457 = vunpack.c.l.b16 %v157
    %v458 = vunpack.c.h.b16 %v157
    %v459 = vunpack.c.l.b16 %v158
    %v460 = vunpack.c.h.b16 %v158
    %v461 = vunpack.c.l.b16 %v159
    %v462 = vunpack.c.h.b16 %v159
    %v463 = vunpack.c.l.b16 %v160
    %v464 = vunpack.c.h.b16 %v160
    %v465 = vunpack.c.l.b16 %v161
    %v466 = vunpack.c.h.b16 %v161
    %v467 = vunpack.c.l.b16 %v162
    %v468 = vunpack.c.h.b16 %v162
    %v469 = vunpack.c.l.b16 %v163
    %v470 = vunpack.c.h.b16 %v163
    %v471 = vunpack.c.l.b16 %v164
    %v472 = vunpack.c.h.b16 %v164
    %v473 = vunpack.c.l.b16 %v165
    %v474 = vunpack.c.h.b16 %v165
    %v475 = vunpack.c.l.b16 %v166
    %v476 = vunpack.c.h.b16 %v166
    %v477 = vunpack.c.l.b16 %v167
    %v478 = vunpack.c.h.b16 %v167
    %v479 = vunpack.c.l.b16 %v168
    %v480 = vunpack.c.h.b16 %v168
    %v481 = vunpack.c.l.b16 %v169
    %v482 = vunpack.c.h.b16 %v169
    %v483 = vunpack.c.l.b16 %v170
    %v484 = vunpack.c.h.b16 %v170
    %v485 = vunpack.c.l.b16 %v171
    %v486 = vunpack.c.h.b16 %v171
    %v487 = vunpack.c.l.b16 %v172
    %v488 = vunpack.c.h.b16 %v172
    %v489 = vunpack.c.l.b16 %v173
    %v490 = vunpack.c.h.b16 %v173
    %v491 = vunpack.c.l.b16 %v174
    %v492 = vunpack.c.h.b16 %v174
    %v493 = vpack.c.b16 %v303, %v301
    %v494 = vpack.c.b16 %v304, %v302
    %v495 = vpack.c.b16 %v307, %v305
    %v496 = vpack.c.b16 %v308, %v306
    %v497 = vpack.c.b16 %v311, %v309
    %v498 = vpack.c.b16 %v312, %v310
    %v499 = vpack.c.b16 %v315, %v313
    %v500 = vpack.c.b16 %v316, %v314
    %v501 = vpack.c.b16 %v319, %v317
    %v502 = vpack.c.b16 %v320, %v318
    %v503 = vpack.c.b16 %v323, %v321
    %v504 = vpack.c.b16 %v324, %v322
    %v505 = vpack.c.b16 %v327, %v325
    %v506 = vpack.c.b16 %v328, %v326
    %v507 = vpack.c.b16 %v331, %v329
    %v508 = vpack.c.b16 %v332, %v330
    %v509 = vpack.c.b16 %v335, %v333
    %v510 = vpack.c.b16 %v336, %v334
    %v511 = vpack.c.b16 %v339, %v337
    %v512 = vpack.c.b16 %v340, %v338
    %v513 = vpack.c.b16 %v343, %v341
    %v514 = vpack.c.b16 %v344, %v342
    %v515 = vpack.c.b16 %v347, %v345
    %v516 = vpack.c.b16 %v348, %v346
    %v517 = vpack.c.b16 %v351, %v349
    %v518 = vpack.c.b16 %v352, %v350
    %v519 = vpack.c.b16 %v355, %v353
    %v520 = vpack.c.b16 %v356, %v354
    %v521 = vpack.c.b16 %v359, %v357
    %v522 = vpack.c.b16 %v360, %v358
    %v523 = vpack.c.b16 %v363, %v361
    %v524 = vpack.c.b16 %v364, %v362
    %v525 = vpack.c.b16 %v367, %v365
    %v526 = vpack.c.b16 %v368, %v366
    %v527 = vpack.c.b16 %v371, %v369
    %v528 = vpack.c.b16 %v372, %v370
    %v529 = vpack.c.b16 %v375, %v373
    %v530 = vpack.c.b16 %v376, %v374
    %v531 = vpack.c.b16 %v379, %v377
    %v532 = vpack.c.b16 %v380, %v378
    %v533 = vpack.c.b16 %v383, %v381
    %v534 = vpack.c.b16 %v384, %v382
    %v535 = vpack.c.b16 %v387, %v385
    %v536 = vpack.c.b16 %v388, %v386
    %v537 = vpack.c.b16 %v391, %v389
    %v538 = vpack.c.b16 %v392, %v390
    %v539 = vpack.c.b16 %v395, %v393
    %v540 = vpack.c.b16 %v396, %v394
    %v541 = vpack.c.b16 %v399, %v397
    %v542 = vpack.c.b16 %v400, %v398
    %v543 = vpack.c.b16 %v403, %v401
    %v544 = vpack.c.b16 %v404, %v402
    %v545 = vpack.c.b16 %v407, %v405
    %v546 = vpack.c.b16 %v408, %v406
    %v547 = vpack.c.b16 %v411, %v409
    %v548 = vpack.c.b16 %v412, %v410
    %v549 = vpack.c.b16 %v415, %v413
    %v550 = vpack.c.b16 %v416, %v414
    %v551 = vpack.c.b16 %v419, %v417
    %v552 = vpack.c.b16 %v420, %v418
    %v553 = vpack.c.b16 %v423, %v421
    %v554 = vpack.c.b16 %v424, %v422
    %v555 = vpack.c.b16 %v427, %v425
    %v556 = vpack.c.b16 %v428, %v426
    %v557 = vpack.c.b16 %v431, %v429
    %v558 = vpack.c.b16 %v432, %v430
    %v559 = vpack.c.b16 %v435, %v433
    %v560 = vpack.c.b16 %v436, %v434
    %v561 = vpack.c.b16 %v439, %v437
    %v562 = vpack.c.b16 %v440, %v438
    %v563 = vpack.c.b16 %v443, %v441
    %v564 = vpack.c.b16 %v444, %v442
    %v565 = vpack.c.b16 %v447, %v445
    %v566 = vpack.c.b16 %v448, %v446
    %v567 = vpack.c.b16 %v451, %v449
    %v568 = vpack.c.b16 %v452, %v450
    %v569 = vpack.c.b16 %v455, %v453
    %v570 = vpack.c.b16 %v456, %v454
    %v571 = vpack.c.b16 %v459, %v457
    %v572 = vpack.c.b16 %v460, %v458
    %v573 = vpack.c.b16 %v463, %v461
    %v574 = vpack.c.b16 %v464, %v462
    %v575 = vpack.c.b16 %v467, %v465
    %v576 = vpack.c.b16 %v468, %v466
    %v577 = vpack.c.b16 %v471, %v469
    %v578 = vpack.c.b16 %v472, %v470
    %v579 = vpack.c.b16 %v475, %v473
    %v580 = vpack.c.b16 %v476, %v474
    %v581 = vpack.c.b16 %v479, %v477
    %v582 = vpack.c.b16 %v480, %v478
    %v583 = vpack.c.b16 %v483, %v481
    %v584 = vpack.c.b16 %v484, %v482
    %v585 = vpack.c.b16 %v487, %v485
    %v586 = vpack.c.b16 %v488, %v486
    %v587 = vpack.c.b16 %v491, %v489
    %v588 = vpack.c.b16 %v492, %v490
    %685 = vmatprep.subr.bf16.mxu0 %v494
    %686 = vmatpush1.bf16.msra.mxu0 %v493
    %687 = vmatprep.subr.bf16.mxu0 %v496
    %688 = vmatpush1.bf16.msra.mxu0 %v495
    %689 = vmatprep.subr.bf16.mxu0 %v498
    %690 = vmatpush1.bf16.msra.mxu0 %v497
    %691 = vmatprep.subr.bf16.mxu0 %v500
    %692 = vmatpush1.bf16.msra.mxu0 %v499
    %693 = vmatprep.subr.bf16.mxu0 %v502
    %694 = vmatpush1.bf16.msra.mxu0 %v501
    %695 = vmatprep.subr.bf16.mxu0 %v504
    %696 = vmatpush1.bf16.msra.mxu0 %v503
    %697 = vmatprep.subr.bf16.mxu0 %v506
    %698 = vmatpush1.bf16.msra.mxu0 %v505
    %699 = vmatprep.subr.bf16.mxu0 %v508
    %700 = vmatpush1.bf16.msra.mxu0 %v507
    %701 = vmatprep.subr.bf16.mxu0 %v510
    %702 = vmatpush1.bf16.msra.mxu0 %v509
    %703 = vmatprep.subr.bf16.mxu0 %v512
    %704 = vmatpush1.bf16.msra.mxu0 %v511
    %705 = vmatprep.subr.bf16.mxu0 %v514
    %706 = vmatpush1.bf16.msra.mxu0 %v513
    %707 = vmatprep.subr.bf16.mxu0 %v516
    %708 = vmatpush1.bf16.msra.mxu0 %v515
    %709 = vmatprep.subr.bf16.mxu0 %v518
    %710 = vmatpush1.bf16.msra.mxu0 %v517
    %711 = vmatprep.subr.bf16.mxu0 %v520
    %712 = vmatpush1.bf16.msra.mxu0 %v519
    %713 = vmatprep.subr.bf16.mxu0 %v522
    %714 = vmatpush1.bf16.msra.mxu0 %v521
    %715 = vmatprep.subr.bf16.mxu0 %v524
    %716 = vmatpush1.bf16.msra.mxu0 %v523
    %717 = vmatprep.mubr.bf16.mxu0 %v194
    %718 = vmatmul.mubr.bf16.gmra.mrb[0].mxu0 %v193
    %v719 = vpop.f32.mrb[0].mxu0
    %v720 = vadd.f32 0.0, %v719
    %v721 = vpop.f32.mrb[0].mxu0
    %v722 = vadd.f32 0.0, %v721
    %v723 = vpop.f32.mrb[0].mxu0
    %v724 = vadd.f32 0.0, %v723
    %v725 = vpop.f32.mrb[0].mxu0
    %v726 = vadd.f32 0.0, %v725
    %727 = vdwg.mxu0
    %728 = vmatprep.subr.bf16.mxu0 %v526
    %729 = vmatpush1.bf16.msra.mxu0 %v525
    %730 = vmatprep.subr.bf16.mxu0 %v528
    %731 = vmatpush1.bf16.msra.mxu0 %v527
    %732 = vmatprep.subr.bf16.mxu0 %v530
    %733 = vmatpush1.bf16.msra.mxu0 %v529
    %734 = vmatprep.subr.bf16.mxu0 %v532
    %735 = vmatpush1.bf16.msra.mxu0 %v531
    %736 = vmatprep.subr.bf16.mxu0 %v534
    %737 = vmatpush1.bf16.msra.mxu0 %v533
    %738 = vmatprep.subr.bf16.mxu0 %v536
    %739 = vmatpush1.bf16.msra.mxu0 %v535
    %740 = vmatprep.subr.bf16.mxu0 %v538
    %741 = vmatpush1.bf16.msra.mxu0 %v537
    %742 = vmatprep.subr.bf16.mxu0 %v540
    %743 = vmatpush1.bf16.msra.mxu0 %v539
    %744 = vmatprep.subr.bf16.mxu0 %v542
    %745 = vmatpush1.bf16.msra.mxu0 %v541
    %746 = vmatprep.subr.bf16.mxu0 %v544
    %747 = vmatpush1.bf16.msra.mxu0 %v543
    %748 = vmatprep.subr.bf16.mxu0 %v546
    %749 = vmatpush1.bf16.msra.mxu0 %v545
    %750 = vmatprep.subr.bf16.mxu0 %v548
    %751 = vmatpush1.bf16.msra.mxu0 %v547
    %752 = vmatprep.subr.bf16.mxu0 %v550
    %753 = vmatpush1.bf16.msra.mxu0 %v549
    %754 = vmatprep.subr.bf16.mxu0 %v552
    %755 = vmatpush1.bf16.msra.mxu0 %v551
    %756 = vmatprep.subr.bf16.mxu0 %v554
    %757 = vmatpush1.bf16.msra.mxu0 %v553
    %758 = vmatprep.subr.bf16.mxu0 %v556
    %759 = vmatpush1.bf16.msra.mxu0 %v555
    %760 = vmatprep.mubr.bf16.mxu0 %v196
    %761 = vmatmul.mubr.bf16.gmra.mrb[0].mxu0 %v195
    %v762 = vpop.f32.mrb[0].mxu0
    %v763 = vadd.f32 %v720, %v762
    %v764 = vpop.f32.mrb[0].mxu0
    %v765 = vadd.f32 %v722, %v764
    %v766 = vpop.f32.mrb[0].mxu0
    %v767 = vadd.f32 %v724, %v766
    %v768 = vpop.f32.mrb[0].mxu0
    %v769 = vadd.f32 %v726, %v768
    %770 = vdwg.mxu0
    %771 = vmatprep.subr.bf16.mxu0 %v558
    %772 = vmatpush1.bf16.msra.mxu0 %v557
    %773 = vmatprep.subr.bf16.mxu0 %v560
    %774 = vmatpush1.bf16.msra.mxu0 %v559
    %775 = vmatprep.subr.bf16.mxu0 %v562
    %776 = vmatpush1.bf16.msra.mxu0 %v561
    %777 = vmatprep.subr.bf16.mxu0 %v564
    %778 = vmatpush1.bf16.msra.mxu0 %v563
    %779 = vmatprep.subr.bf16.mxu0 %v566
    %780 = vmatpush1.bf16.msra.mxu0 %v565
    %781 = vmatprep.subr.bf16.mxu0 %v568
    %782 = vmatpush1.bf16.msra.mxu0 %v567
    %783 = vmatprep.subr.bf16.mxu0 %v570
    %784 = vmatpush1.bf16.msra.mxu0 %v569
    %785 = vmatprep.subr.bf16.mxu0 %v572
    %786 = vmatpush1.bf16.msra.mxu0 %v571
    %787 = vmatprep.subr.bf16.mxu0 %v574
    %788 = vmatpush1.bf16.msra.mxu0 %v573
    %789 = vmatprep.subr.bf16.mxu0 %v576
    %790 = vmatpush1.bf16.msra.mxu0 %v575
    %791 = vmatprep.subr.bf16.mxu0 %v578
    %792 = vmatpush1.bf16.msra.mxu0 %v577
    %793 = vmatprep.subr.bf16.mxu0 %v580
    %794 = vmatpush1.bf16.msra.mxu0 %v579
    %795 = vmatprep.subr.bf16.mxu0 %v582
    %796 = vmatpush1.bf16.msra.mxu0 %v581
    %797 = vmatprep.subr.bf16.mxu0 %v584
    %798 = vmatpush1.bf16.msra.mxu0 %v583
    %799 = vmatprep.subr.bf16.mxu0 %v586
    %800 = vmatpush1.bf16.msra.mxu0 %v585
    %801 = vmatprep.subr.bf16.mxu0 %v588
    %802 = vmatpush1.bf16.msra.mxu0 %v587
    %803 = vmatprep.mubr.bf16.mxu0 %v198
    %804 = vmatmul.mubr.bf16.gmra.mrb[0].mxu0 %v197
    %v805 = vpop.f32.mrb[0].mxu0
    %v806 = vadd.f32 %v763, %v805
    %v807 = vpop.f32.mrb[0].mxu0
    %v808 = vadd.f32 %v765, %v807
    %v809 = vpop.f32.mrb[0].mxu0
    %v810 = vadd.f32 %v767, %v809
    %v811 = vpop.f32.mrb[0].mxu0
    %v812 = vadd.f32 %v769, %v811
    %813 = vdwg.mxu0
    %v814 = vadd.f32 %v69, %v806
    %v815 = vadd.f32 %v70, %v808
    %v816 = vadd.f32 %v71, %v810
    %v817 = vadd.f32 %v72, %v812
    %818 = vst [vmem:[#allocation2] sm:$0xff] %v814
    %819 = vst [vmem:[#allocation2 + $0x8] sm:$0xff] %v815
    %820 = vst [vmem:[#allocation2 + $0x10] sm:$0xff] %v816
    %821 = vst [vmem:[#allocation2 + $0x18] sm:$0xff] %v817
    // Predicated region
    $region34: #{tpu_custom_call.1} parent=1 // pred_check
      %p822 = pneg %p61
    $region35: #{tpu_custom_call.1} parent=1 // pred_check_branch
      %824 = sbr.rel (%p822) target = $region37
    $region36: #{tpu_custom_call.1} parent=1 // pred_region
      %v825 = vld [vmem:[#allocation2] sm:$0xff]
      %v826 = vld [vmem:[#allocation2 + $0x8] sm:$0xff]
      %v827 = vld [vmem:[#allocation2 + $0x10] sm:$0xff]
      %v828 = vld [vmem:[#allocation2 + $0x18] sm:$0xff]
      %v829 = vmul.f32 %v825, %v825
      %v830 = vmul.f32 %v826, %v826
      %v831 = vmul.f32 %v827, %v827
      %v832 = vmul.f32 %v828, %v828
      %v833 = vadd.f32 %v829, %v830
      %834 = vadd.xlane.f32.xlu0 %v833
      %v835 = vpop.xlane.xlu0 %834
      %v836 = vadd.f32 %v831, %v832
      %837 = vadd.xlane.f32.xlu0 %v836
      %v838 = vpop.xlane.xlu0 %837
      %v839 = vmax.f32 %v835, 1e-30
      %v840 = vmax.f32 %v838, 1e-30
      %v841 = vrsqrt.pop %v839
      %v842 = vrsqrt.pop %v840
      %v843 = vmul.f32 %v825, %v841
      %v844 = vmul.f32 %v826, %v841
      %v845 = vmul.f32 %v827, %v842
      %v846 = vmul.f32 %v828, %v842
      %s847 = sld [smem:[#allocation3]]
      %v848 = vpack.c.bf16 %v845, %v843
      %v849 = vpack.c.bf16 %v846, %v844
      %v850 = vld [vmem:[#allocation9] sm:$0xff]
      %v851 = vld [vmem:[#allocation9 + $0x8] sm:$0xff]
      %v852 = vld [vmem:[#allocation9 + $0x10] sm:$0xff]
      %v853 = vld [vmem:[#allocation9 + $0x18] sm:$0xff]
      %v854 = vld [vmem:[#allocation9 + $0x20] sm:$0xff]
      %v855 = vld [vmem:[#allocation9 + $0x28] sm:$0xff]
      %v856 = vld [vmem:[#allocation9 + $0x30] sm:$0xff]
      %v857 = vld [vmem:[#allocation9 + $0x38] sm:$0xff]
      %v858 = vld [vmem:[#allocation9 + $0x40] sm:$0xff]
      %v859 = vld [vmem:[#allocation9 + $0x48] sm:$0xff]
      %v860 = vld [vmem:[#allocation9 + $0x50] sm:$0xff]
      %v861 = vld [vmem:[#allocation9 + $0x58] sm:$0xff]
      %v862 = vld [vmem:[#allocation9 + $0x60] sm:$0xff]
      %v863 = vld [vmem:[#allocation9 + $0x68] sm:$0xff]
      %v864 = vld [vmem:[#allocation9 + $0x70] sm:$0xff]
      %v865 = vld [vmem:[#allocation9 + $0x78] sm:$0xff]
      %v882 = vunpack.c.l.b16 %v850
      %v883 = vunpack.c.h.b16 %v850
      %v884 = vunpack.c.l.b16 %v851
      %v885 = vunpack.c.h.b16 %v851
      %v886 = vunpack.c.l.b16 %v852
      %v887 = vunpack.c.h.b16 %v852
      %v888 = vunpack.c.l.b16 %v853
      %v889 = vunpack.c.h.b16 %v853
      %v890 = vunpack.c.l.b16 %v854
      %v891 = vunpack.c.h.b16 %v854
      %v892 = vunpack.c.l.b16 %v855
      %v893 = vunpack.c.h.b16 %v855
      %v894 = vunpack.c.l.b16 %v856
      %v895 = vunpack.c.h.b16 %v856
      %v896 = vunpack.c.l.b16 %v857
      %v897 = vunpack.c.h.b16 %v857
      %v898 = vunpack.c.l.b16 %v858
      %v899 = vunpack.c.h.b16 %v858
      %v900 = vunpack.c.l.b16 %v859
      %v901 = vunpack.c.h.b16 %v859
      %v902 = vunpack.c.l.b16 %v860
      %v903 = vunpack.c.h.b16 %v860
      %v904 = vunpack.c.l.b16 %v861
      %v905 = vunpack.c.h.b16 %v861
      %v906 = vunpack.c.l.b16 %v862
      %v907 = vunpack.c.h.b16 %v862
      %v908 = vunpack.c.l.b16 %v863
      %v909 = vunpack.c.h.b16 %v863
      %v910 = vunpack.c.l.b16 %v864
      %v911 = vunpack.c.h.b16 %v864
      %v912 = vunpack.c.l.b16 %v865
      %v913 = vunpack.c.h.b16 %v865
      %v914 = vpack.c.b16 %v884, %v882
      %v915 = vpack.c.b16 %v885, %v883
      %v916 = vpack.c.b16 %v888, %v886
      %v917 = vpack.c.b16 %v889, %v887
      %v918 = vpack.c.b16 %v892, %v890
      %v919 = vpack.c.b16 %v893, %v891
      %v920 = vpack.c.b16 %v896, %v894
      %v921 = vpack.c.b16 %v897, %v895
      %v922 = vpack.c.b16 %v900, %v898
      %v923 = vpack.c.b16 %v901, %v899
      %v924 = vpack.c.b16 %v904, %v902
      %v925 = vpack.c.b16 %v905, %v903
      %v926 = vpack.c.b16 %v908, %v906
      %v927 = vpack.c.b16 %v909, %v907
      %v928 = vpack.c.b16 %v912, %v910
      %v929 = vpack.c.b16 %v913, %v911
      %946 = vmatprep.subr.bf16.mxu0 %v915
      %947 = vmatpush1.bf16.xpose.msra.mxu0 %v914
      %948 = vmatprep.subr.bf16.mxu0 %v917
      %949 = vmatpush1.bf16.xpose.msra.mxu0 %v916
      %950 = vmatprep.subr.bf16.mxu0 %v919
      %951 = vmatpush1.bf16.xpose.msra.mxu0 %v918
      %952 = vmatprep.subr.bf16.mxu0 %v921
      %953 = vmatpush1.bf16.xpose.msra.mxu0 %v920
      %954 = vmatprep.subr.bf16.mxu0 %v923
      %955 = vmatpush1.bf16.xpose.msra.mxu0 %v922
      %956 = vmatprep.subr.bf16.mxu0 %v925
      %957 = vmatpush1.bf16.xpose.msra.mxu0 %v924
      %958 = vmatprep.subr.bf16.mxu0 %v927
      %959 = vmatpush1.bf16.xpose.msra.mxu0 %v926
      %960 = vmatprep.subr.bf16.mxu0 %v929
      %961 = vmatpush1.bf16.xpose.msra.mxu0 %v928
      %962 = vmatprep.subr.bf16.mxu0 0
      %963 = vmatpush1.bf16.xpose.msra.mxu0 0
      %964 = vmatprep.subr.bf16.mxu0 0
      %965 = vmatpush1.bf16.xpose.msra.mxu0 0
      %966 = vmatprep.subr.bf16.mxu0 0
      %967 = vmatpush1.bf16.xpose.msra.mxu0 0
      %968 = vmatprep.subr.bf16.mxu0 0
      %969 = vmatpush1.bf16.xpose.msra.mxu0 0
      %970 = vmatprep.subr.bf16.mxu0 0
      %971 = vmatpush1.bf16.xpose.msra.mxu0 0
      %972 = vmatprep.subr.bf16.mxu0 0
      %973 = vmatpush1.bf16.xpose.msra.mxu0 0
      %974 = vmatprep.subr.bf16.mxu0 0
      %975 = vmatpush1.bf16.xpose.msra.mxu0 0
      %976 = vmatprep.subr.bf16.mxu0 0
      %977 = vmatpush1.bf16.xpose.msra.mxu0 0
      %978 = vmatprep.mubr.bf16.mxu0 %v849
      %979 = vmatmul.mubr.bf16.gmra.mrb[0].mxu0 %v848
      %v980 = vpop.f32.mrb[0].mxu0
      %v981 = vadd.f32 0.0, %v980
      %v982 = vpop.f32.mrb[0].mxu0
      %v983 = vpop.f32.mrb[0].mxu0
      %v984 = vadd.f32 0.0, %v983
      %v985 = vpop.f32.mrb[0].mxu0
      %986 = vdwg.mxu0
      %v987 = vstv %s847
      %v988 = vmul.f32 %v987, %v981
      %v989 = vmul.f32 %v987, %v984
      %v990 = vlaneseq
      %v991 = vand.u32 %v990, 127
      %vm992 = vcmp.lt.s32.totalorder %v991, 8
      %v993 = vsel %vm992, %v988, -inf
      %v994 = vsel %vm992, %v989, -inf
      %995 = vmax.xlane.f32.xlu0 %v993
      %v996 = vpop.xlane.xlu0 %995
      %997 = vmax.xlane.f32.xlu0 %v994
      %v998 = vpop.xlane.xlu0 %997
      %v999 = vsub.f32 %v993, %v996
      %v1000 = vsub.f32 %v994, %v998
      %v1001 = vmul.f32 %v999, 1.442695
      %v1002 = vpow.pop %v1001
      %v1003 = vmul.f32 %v1000, 1.442695
      %v1004 = vpow.pop %v1003
      %1005 = vadd.xlane.f32.xlu0 %v1002
      %v1006 = vpop.xlane.xlu0 %1005
      %1007 = vadd.xlane.f32.xlu0 %v1004
      %v1008 = vpop.xlane.xlu0 %1007
      %v1009 = vrcp.pop %v1006
      %v1010 = vmul.f32 %v1002, %v1009
      %v1011 = vrcp.pop %v1008
      %v1012 = vmul.f32 %v1004, %v1011
      %1013 = vst [vmem:[#allocation10] sm:$0xff] %v1010
      %1014 = vst [vmem:[#allocation10 + $0x8] sm:$0xff] %v1012
    $region37: #{tpu_custom_call.1} parent=1 // pred_fallthru
      _
    // Predicated region
    $region38: #{tpu_custom_call.1} parent=1 // pred_check
      _
    $region39: #{tpu_custom_call.1} parent=1 // pred_check_branch
      %1016 = sbr.rel (0) target = $region41
    $region40: #{tpu_custom_call.1} parent=1 // pred_region
      %s1018 = ssub.s32 256, 256
      %1019 = vsyncadd [#allocation6], %s1018
      %s1020 = sshll.u32 [#allocation10], 4
      %s1021 = int_to_ptr.vmem [resolvable:$true] %s1020
      %1026 = dma.vmem_to_hbm [thread:$0]  %s1021, 256, %s4, [#allocation6], 128, 128, 8
    $region41: #{tpu_custom_call.1} parent=1 // pred_fallthru
      _
    // Predicated region
    $region42: #{tpu_custom_call.1} parent=1 // pred_check
      _
    $region43: #{tpu_custom_call.1} parent=1 // pred_check_branch
      %1028 = sbr.rel (0) target = $region45
    $region44: #{tpu_custom_call.1} parent=1 // pred_region
      %1029 = dma.done [#allocation6], 256
    $region45: #{tpu_custom_call.1} parent=1 // pred_fallthru
      _
    %1030 = vsyncpa [#allocation5], 1
    %1031 = vsyncpa [#allocation8], 1
    %1032 = vsyncpa [#allocation6], 1

// kernel: tpu_custom_call.1
$region0: #{tpu_custom_call.1}
  #allocation0 [shape = 'u32[]', space=smem, size = 0x4, offset = 0x4, fixed_abs, tag = 'smem constant byte address 0x4 - core index']
  #allocation1 [shape = 'u32[144,128]{1,0:T(1,128)}', space=vmem, size = 0x12000, scoped, tag = 'internal scratch']
  #allocation2 [shape = 'f32[16,256]{1,0:T(8,128)}', space=vmem, size = 0x4000, scoped, tag = 'scratch operand']
  #allocation3 [shape = 'f32[1,1]{1,0:T(1,128)S(6)}', space=smem, size = 0x200, scoped, tag = 'scoped memory for tpu_custom_call.1']
  %s0 = inlined_call_operand.<no memory space> [shape: f32[1,1], index: 0, kind: input, shape index: {}]
  %s1 = inlined_call_operand.hbm [shape: bf16[16,768], index: 1, kind: input, shape index: {}]
  %s2 = inlined_call_operand.hbm [shape: bf16[768,256], index: 2, kind: input, shape index: {}]
  %s3 = inlined_call_operand.hbm [shape: bf16[128,256], index: 3, kind: input, shape index: {}]
  %s4 = inlined_call_operand.hbm [shape: f32[16,128], index: 4, kind: output, shape index: {}]
  %s5 = sld [smem:[#allocation0]]
  $region46: #{tpu_custom_call.1} parent=0
    _
  %s7 = ssub.s32 1, %s5
  %s8 = scalar_select 0, %s7, %s5
  %9 = sst [smem:[#allocation3]] %s0
  $region1: #{tpu_custom_call.1} parent=0
    #allocation4 [shape = 'u8[24576]{0}', space=vmem, size = 0x6000, scoped, tag = 'input window, operand 1, single buffered']
    #allocation5 [shape = 's32[1]{0}', space=sflag, size = 0x4, scoped, tag = 'scoped memory for tpu_custom_call.1']
    #allocation6 [shape = 's32[1]{0}', space=sflag, size = 0x4, scoped, tag = 'scoped memory for tpu_custom_call.1']
    #allocation7 [shape = 'u8[393216]{0}', space=vmem, size = 0x60000, scoped, tag = 'input window, operand 2, single buffered']
    #allocation8 [shape = 's32[1]{0}', space=sflag, size = 0x4, scoped, tag = 'scoped memory for tpu_custom_call.1']
    #allocation9 [shape = 'u8[65536]{0}', space=vmem, size = 0x10000, scoped, tag = 'input window, operand 3, single buffered']
    #allocation10 [shape = 'u8[8192]{0}', space=vmem, size = 0x2000, scoped, tag = 'output window, operand 0, single buffered']
    %10 = vsyncpa [#allocation5], 0
    %11 = vsyncpa [#allocation8], 0
    %12 = vsyncpa [#allocation6], 0
    // Predicated region
    $region2: #{tpu_custom_call.1} parent=1 // pred_check
      _
    $region3: #{tpu_custom_call.1} parent=1 // pred_check_branch
      %14 = sbr.rel (0) target = $region5
    $region4: #{tpu_custom_call.1} parent=1 // pred_region
      _
    $region5: #{tpu_custom_call.1} parent=1 // pred_fallthru
      _
    // Predicated region
    $region6: #{tpu_custom_call.1} parent=1 // pred_check
      _
    $region7: #{tpu_custom_call.1} parent=1 // pred_check_branch
      %16 = sbr.rel (0) target = $region9
    $region8: #{tpu_custom_call.1} parent=1 // pred_region
      %s18 = ssub.s32 768, 768
      %19 = vsyncadd [#allocation5], %s18
      %s20 = sshll.u32 [#allocation4], 4
      %s21 = int_to_ptr.vmem [resolvable:$true] %s20
      %26 = dma.hbm_to_vmem [thread:$0]  %s1, 768, %s21, [#allocation5], 384, 384, 24
    $region9: #{tpu_custom_call.1} parent=1 // pred_fallthru
      _
    // Predicated region
    $region10: #{tpu_custom_call.1} parent=1 // pred_check
      _
    $region11: #{tpu_custom_call.1} parent=1 // pred_check_branch
      %28 = sbr.rel (0) target = $region13
    $region12: #{tpu_custom_call.1} parent=1 // pred_region
      %s30 = ssub.s32 12288, 12288
      %31 = vsyncadd [#allocation8], %s30
      %s32 = sshll.u32 [#allocation7], 4
      %s33 = int_to_ptr.vmem [resolvable:$true] %s32
      %38 = dma.hbm_to_vmem [thread:$0]  %s2, 12288, %s33, [#allocation8], 128, 128, 8
    $region13: #{tpu_custom_call.1} parent=1 // pred_fallthru
      _
    // Predicated region
    $region14: #{tpu_custom_call.1} parent=1 // pred_check
      _
    $region15: #{tpu_custom_call.1} parent=1 // pred_check_branch
      %40 = sbr.rel (0) target = $region17
    $region16: #{tpu_custom_call.1} parent=1 // pred_region
      %s42 = ssub.s32 2048, 2048
      %43 = vsyncadd [#allocation8], %s42
      %s44 = sshll.u32 [#allocation9], 4
      %s45 = int_to_ptr.vmem [resolvable:$true] %s44
      %50 = dma.hbm_to_vmem [thread:$0]  %s3, 2048, %s45, [#allocation8], 128, 128, 8
    $region17: #{tpu_custom_call.1} parent=1 // pred_fallthru
      _
    // Predicated region
    $region18: #{tpu_custom_call.1} parent=1 // pred_check
      _
    $region19: #{tpu_custom_call.1} parent=1 // pred_check_branch
      %52 = sbr.rel (0) target = $region21
    $region20: #{tpu_custom_call.1} parent=1 // pred_region
      %53 = dma.done [#allocation5], 768
    $region21: #{tpu_custom_call.1} parent=1 // pred_fallthru
      _
    // Predicated region
    $region22: #{tpu_custom_call.1} parent=1 // pred_check
      _
    $region23: #{tpu_custom_call.1} parent=1 // pred_check_branch
      %55 = sbr.rel (0) target = $region25
    $region24: #{tpu_custom_call.1} parent=1 // pred_region
      %56 = dma.done [#allocation8], 12288
    $region25: #{tpu_custom_call.1} parent=1 // pred_fallthru
      _
    // Predicated region
    $region26: #{tpu_custom_call.1} parent=1 // pred_check
      _
    $region27: #{tpu_custom_call.1} parent=1 // pred_check_branch
      %58 = sbr.rel (0) target = $region29
    $region28: #{tpu_custom_call.1} parent=1 // pred_region
      %59 = dma.done [#allocation8], 2048
    $region29: #{tpu_custom_call.1} parent=1 // pred_fallthru
      _
    %p61 = scmp.eq.s32.totalorder 0, 0
    // Predicated region
    $region30: #{tpu_custom_call.1} parent=1 // pred_check
      %p62 = pneg %p61
    $region31: #{tpu_custom_call.1} parent=1 // pred_check_branch
      %64 = sbr.rel (%p62) target = $region33
    $region32: #{tpu_custom_call.1} parent=1 // pred_region
      %65 = vst [vmem:[#allocation2] sm:$0xff] 0.0
      %66 = vst [vmem:[#allocation2 + $0x8] sm:$0xff] 0.0
      %67 = vst [vmem:[#allocation2 + $0x10] sm:$0xff] 0.0
      %68 = vst [vmem:[#allocation2 + $0x18] sm:$0xff] 0.0
    $region33: #{tpu_custom_call.1} parent=1 // pred_fallthru
      _
    %v69 = vld [vmem:[#allocation2] sm:$0xff]
    %v70 = vld [vmem:[#allocation2 + $0x8] sm:$0xff]
    %v71 = vld [vmem:[#allocation2 + $0x10] sm:$0xff]
    %v72 = vld [vmem:[#allocation2 + $0x18] sm:$0xff]
    %v73 = vld [vmem:[#allocation4] sm:$0xff]
    %v74 = vld [vmem:[#allocation4 + $0x8] sm:$0xff]
    %v75 = vld [vmem:[#allocation4 + $0x10] sm:$0xff]
    %v76 = vld [vmem:[#allocation4 + $0x18] sm:$0xff]
    %v77 = vld [vmem:[#allocation4 + $0x20] sm:$0xff]
    %v78 = vld [vmem:[#allocation4 + $0x28] sm:$0xff]
    %v79 = vld [vmem:[#allocation7] sm:$0xff]
    %v80 = vld [vmem:[#allocation7 + $0x8] sm:$0xff]
    %v81 = vld [vmem:[#allocation7 + $0x10] sm:$0xff]
    %v82 = vld [vmem:[#allocation7 + $0x18] sm:$0xff]
    %v83 = vld [vmem:[#allocation7 + $0x20] sm:$0xff]
    %v84 = vld [vmem:[#allocation7 + $0x28] sm:$0xff]
    %v85 = vld [vmem:[#allocation7 + $0x30] sm:$0xff]
    %v86 = vld [vmem:[#allocation7 + $0x38] sm:$0xff]
    %v87 = vld [vmem:[#allocation7 + $0x40] sm:$0xff]
    %v88 = vld [vmem:[#allocation7 + $0x48] sm:$0xff]
    %v89 = vld [vmem:[#allocation7 + $0x50] sm:$0xff]
    %v90 = vld [vmem:[#allocation7 + $0x58] sm:$0xff]
    %v91 = vld [vmem:[#allocation7 + $0x60] sm:$0xff]
    %v92 = vld [vmem:[#allocation7 + $0x68] sm:$0xff]
    %v93 = vld [vmem:[#allocation7 + $0x70] sm:$0xff]
    %v94 = vld [vmem:[#allocation7 + $0x78] sm:$0xff]
    %v95 = vld [vmem:[#allocation7 + $0x80] sm:$0xff]
    %v96 = vld [vmem:[#allocation7 + $0x88] sm:$0xff]
    %v97 = vld [vmem:[#allocation7 + $0x90] sm:$0xff]
    %v98 = vld [vmem:[#allocation7 + $0x98] sm:$0xff]
    %v99 = vld [vmem:[#allocation7 + $0xa0] sm:$0xff]
    %v100 = vld [vmem:[#allocation7 + $0xa8] sm:$0xff]
    %v101 = vld [vmem:[#allocation7 + $0xb0] sm:$0xff]
    %v102 = vld [vmem:[#allocation7 + $0xb8] sm:$0xff]
    %v103 = vld [vmem:[#allocation7 + $0xc0] sm:$0xff]
    %v104 = vld [vmem:[#allocation7 + $0xc8] sm:$0xff]
    %v105 = vld [vmem:[#allocation7 + $0xd0] sm:$0xff]
    %v106 = vld [vmem:[#allocation7 + $0xd8] sm:$0xff]
    %v107 = vld [vmem:[#allocation7 + $0xe0] sm:$0xff]
    %v108 = vld [vmem:[#allocation7 + $0xe8] sm:$0xff]
    %v109 = vld [vmem:[#allocation7 + $0xf0] sm:$0xff]
    %v110 = vld [vmem:[#allocation7 + $0xf8] sm:$0xff]
    %v111 = vld [vmem:[#allocation7 + $0x100] sm:$0xff]
    %v112 = vld [vmem:[#allocation7 + $0x108] sm:$0xff]
    %v113 = vld [vmem:[#allocation7 + $0x110] sm:$0xff]
    %v114 = vld [vmem:[#allocation7 + $0x118] sm:$0xff]
    %v115 = vld [vmem:[#allocation7 + $0x120] sm:$0xff]
    %v116 = vld [vmem:[#allocation7 + $0x128] sm:$0xff]
    %v117 = vld [vmem:[#allocation7 + $0x130] sm:$0xff]
    %v118 = vld [vmem:[#allocation7 + $0x138] sm:$0xff]
    %v119 = vld [vmem:[#allocation7 + $0x140] sm:$0xff]
    %v120 = vld [vmem:[#allocation7 + $0x148] sm:$0xff]
    %v121 = vld [vmem:[#allocation7 + $0x150] sm:$0xff]
    %v122 = vld [vmem:[#allocation7 + $0x158] sm:$0xff]
    %v123 = vld [vmem:[#allocation7 + $0x160] sm:$0xff]
    %v124 = vld [vmem:[#allocation7 + $0x168] sm:$0xff]
    %v125 = vld [vmem:[#allocation7 + $0x170] sm:$0xff]
    %v126 = vld [vmem:[#allocation7 + $0x178] sm:$0xff]
    %v127 = vld [vmem:[#allocation7 + $0x180] sm:$0xff]
    %v128 = vld [vmem:[#allocation7 + $0x188] sm:$0xff]
    %v129 = vld [vmem:[#allocation7 + $0x190] sm:$0xff]
    %v130 = vld [vmem:[#allocation7 + $0x198] sm:$0xff]
    %v131 = vld [vmem:[#allocation7 + $0x1a0] sm:$0xff]
    %v132 = vld [vmem:[#allocation7 + $0x1a8] sm:$0xff]
    %v133 = vld [vmem:[#allocation7 + $0x1b0] sm:$0xff]
    %v134 = vld [vmem:[#allocation7 + $0x1b8] sm:$0xff]
    %v135 = vld [vmem:[#allocation7 + $0x1c0] sm:$0xff]
    %v136 = vld [vmem:[#allocation7 + $0x1c8] sm:$0xff]
    %v137 = vld [vmem:[#allocation7 + $0x1d0] sm:$0xff]
    %v138 = vld [vmem:[#allocation7 + $0x1d8] sm:$0xff]
    %v139 = vld [vmem:[#allocation7 + $0x1e0] sm:$0xff]
    %v140 = vld [vmem:[#allocation7 + $0x1e8] sm:$0xff]
    %v141 = vld [vmem:[#allocation7 + $0x1f0] sm:$0xff]
    %v142 = vld [vmem:[#allocation7 + $0x1f8] sm:$0xff]
    %v143 = vld [vmem:[#allocation7 + $0x200] sm:$0xff]
    %v144 = vld [vmem:[#allocation7 + $0x208] sm:$0xff]
    %v145 = vld [vmem:[#allocation7 + $0x210] sm:$0xff]
    %v146 = vld [vmem:[#allocation7 + $0x218] sm:$0xff]
    %v147 = vld [vmem:[#allocation7 + $0x220] sm:$0xff]
    %v148 = vld [vmem:[#allocation7 + $0x228] sm:$0xff]
    %v149 = vld [vmem:[#allocation7 + $0x230] sm:$0xff]
    %v150 = vld [vmem:[#allocation7 + $0x238] sm:$0xff]
    %v151 = vld [vmem:[#allocation7 + $0x240] sm:$0xff]
    %v152 = vld [vmem:[#allocation7 + $0x248] sm:$0xff]
    %v153 = vld [vmem:[#allocation7 + $0x250] sm:$0xff]
    %v154 = vld [vmem:[#allocation7 + $0x258] sm:$0xff]
    %v155 = vld [vmem:[#allocation7 + $0x260] sm:$0xff]
    %v156 = vld [vmem:[#allocation7 + $0x268] sm:$0xff]
    %v157 = vld [vmem:[#allocation7 + $0x270] sm:$0xff]
    %v158 = vld [vmem:[#allocation7 + $0x278] sm:$0xff]
    %v159 = vld [vmem:[#allocation7 + $0x280] sm:$0xff]
    %v160 = vld [vmem:[#allocation7 + $0x288] sm:$0xff]
    %v161 = vld [vmem:[#allocation7 + $0x290] sm:$0xff]
    %v162 = vld [vmem:[#allocation7 + $0x298] sm:$0xff]
    %v163 = vld [vmem:[#allocation7 + $0x2a0] sm:$0xff]
    %v164 = vld [vmem:[#allocation7 + $0x2a8] sm:$0xff]
    %v165 = vld [vmem:[#allocation7 + $0x2b0] sm:$0xff]
    %v166 = vld [vmem:[#allocation7 + $0x2b8] sm:$0xff]
    %v167 = vld [vmem:[#allocation7 + $0x2c0] sm:$0xff]
    %v168 = vld [vmem:[#allocation7 + $0x2c8] sm:$0xff]
    %v169 = vld [vmem:[#allocation7 + $0x2d0] sm:$0xff]
    %v170 = vld [vmem:[#allocation7 + $0x2d8] sm:$0xff]
    %v171 = vld [vmem:[#allocation7 + $0x2e0] sm:$0xff]
    %v172 = vld [vmem:[#allocation7 + $0x2e8] sm:$0xff]
    %v173 = vld [vmem:[#allocation7 + $0x2f0] sm:$0xff]
    %v174 = vld [vmem:[#allocation7 + $0x2f8] sm:$0xff]
    %v181 = vunpack.c.l.b16 %v73
    %v182 = vunpack.c.h.b16 %v73
    %v183 = vunpack.c.l.b16 %v74
    %v184 = vunpack.c.h.b16 %v74
    %v185 = vunpack.c.l.b16 %v75
    %v186 = vunpack.c.h.b16 %v75
    %v187 = vunpack.c.l.b16 %v76
    %v188 = vunpack.c.h.b16 %v76
    %v189 = vunpack.c.l.b16 %v77
    %v190 = vunpack.c.h.b16 %v77
    %v191 = vunpack.c.l.b16 %v78
    %v192 = vunpack.c.h.b16 %v78
    %v193 = vpack.c.b16 %v187, %v181
    %v194 = vpack.c.b16 %v188, %v182
    %v195 = vpack.c.b16 %v189, %v183
    %v196 = vpack.c.b16 %v190, %v184
    %v197 = vpack.c.b16 %v191, %v185
    %v198 = vpack.c.b16 %v192, %v186
    %v301 = vunpack.c.l.b16 %v79
    %v302 = vunpack.c.h.b16 %v79
    %v303 = vunpack.c.l.b16 %v80
    %v304 = vunpack.c.h.b16 %v80
    %v305 = vunpack.c.l.b16 %v81
    %v306 = vunpack.c.h.b16 %v81
    %v307 = vunpack.c.l.b16 %v82
    %v308 = vunpack.c.h.b16 %v82
    %v309 = vunpack.c.l.b16 %v83
    %v310 = vunpack.c.h.b16 %v83
    %v311 = vunpack.c.l.b16 %v84
    %v312 = vunpack.c.h.b16 %v84
    %v313 = vunpack.c.l.b16 %v85
    %v314 = vunpack.c.h.b16 %v85
    %v315 = vunpack.c.l.b16 %v86
    %v316 = vunpack.c.h.b16 %v86
    %v317 = vunpack.c.l.b16 %v87
    %v318 = vunpack.c.h.b16 %v87
    %v319 = vunpack.c.l.b16 %v88
    %v320 = vunpack.c.h.b16 %v88
    %v321 = vunpack.c.l.b16 %v89
    %v322 = vunpack.c.h.b16 %v89
    %v323 = vunpack.c.l.b16 %v90
    %v324 = vunpack.c.h.b16 %v90
    %v325 = vunpack.c.l.b16 %v91
    %v326 = vunpack.c.h.b16 %v91
    %v327 = vunpack.c.l.b16 %v92
    %v328 = vunpack.c.h.b16 %v92
    %v329 = vunpack.c.l.b16 %v93
    %v330 = vunpack.c.h.b16 %v93
    %v331 = vunpack.c.l.b16 %v94
    %v332 = vunpack.c.h.b16 %v94
    %v333 = vunpack.c.l.b16 %v95
    %v334 = vunpack.c.h.b16 %v95
    %v335 = vunpack.c.l.b16 %v96
    %v336 = vunpack.c.h.b16 %v96
    %v337 = vunpack.c.l.b16 %v97
    %v338 = vunpack.c.h.b16 %v97
    %v339 = vunpack.c.l.b16 %v98
    %v340 = vunpack.c.h.b16 %v98
    %v341 = vunpack.c.l.b16 %v99
    %v342 = vunpack.c.h.b16 %v99
    %v343 = vunpack.c.l.b16 %v100
    %v344 = vunpack.c.h.b16 %v100
    %v345 = vunpack.c.l.b16 %v101
    %v346 = vunpack.c.h.b16 %v101
    %v347 = vunpack.c.l.b16 %v102
    %v348 = vunpack.c.h.b16 %v102
    %v349 = vunpack.c.l.b16 %v103
    %v350 = vunpack.c.h.b16 %v103
    %v351 = vunpack.c.l.b16 %v104
    %v352 = vunpack.c.h.b16 %v104
    %v353 = vunpack.c.l.b16 %v105
    %v354 = vunpack.c.h.b16 %v105
    %v355 = vunpack.c.l.b16 %v106
    %v356 = vunpack.c.h.b16 %v106
    %v357 = vunpack.c.l.b16 %v107
    %v358 = vunpack.c.h.b16 %v107
    %v359 = vunpack.c.l.b16 %v108
    %v360 = vunpack.c.h.b16 %v108
    %v361 = vunpack.c.l.b16 %v109
    %v362 = vunpack.c.h.b16 %v109
    %v363 = vunpack.c.l.b16 %v110
    %v364 = vunpack.c.h.b16 %v110
    %v365 = vunpack.c.l.b16 %v111
    %v366 = vunpack.c.h.b16 %v111
    %v367 = vunpack.c.l.b16 %v112
    %v368 = vunpack.c.h.b16 %v112
    %v369 = vunpack.c.l.b16 %v113
    %v370 = vunpack.c.h.b16 %v113
    %v371 = vunpack.c.l.b16 %v114
    %v372 = vunpack.c.h.b16 %v114
    %v373 = vunpack.c.l.b16 %v115
    %v374 = vunpack.c.h.b16 %v115
    %v375 = vunpack.c.l.b16 %v116
    %v376 = vunpack.c.h.b16 %v116
    %v377 = vunpack.c.l.b16 %v117
    %v378 = vunpack.c.h.b16 %v117
    %v379 = vunpack.c.l.b16 %v118
    %v380 = vunpack.c.h.b16 %v118
    %v381 = vunpack.c.l.b16 %v119
    %v382 = vunpack.c.h.b16 %v119
    %v383 = vunpack.c.l.b16 %v120
    %v384 = vunpack.c.h.b16 %v120
    %v385 = vunpack.c.l.b16 %v121
    %v386 = vunpack.c.h.b16 %v121
    %v387 = vunpack.c.l.b16 %v122
    %v388 = vunpack.c.h.b16 %v122
    %v389 = vunpack.c.l.b16 %v123
    %v390 = vunpack.c.h.b16 %v123
    %v391 = vunpack.c.l.b16 %v124
    %v392 = vunpack.c.h.b16 %v124
    %v393 = vunpack.c.l.b16 %v125
    %v394 = vunpack.c.h.b16 %v125
    %v395 = vunpack.c.l.b16 %v126
    %v396 = vunpack.c.h.b16 %v126
    %v397 = vunpack.c.l.b16 %v127
    %v398 = vunpack.c.h.b16 %v127
    %v399 = vunpack.c.l.b16 %v128
    %v400 = vunpack.c.h.b16 %v128
    %v401 = vunpack.c.l.b16 %v129
    %v402 = vunpack.c.h.b16 %v129
    %v403 = vunpack.c.l.b16 %v130
    %v404 = vunpack.c.h.b16 %v130
    %v405 = vunpack.c.l.b16 %v131
    %v406 = vunpack.c.h.b16 %v131
    %v407 = vunpack.c.l.b16 %v132
    %v408 = vunpack.c.h.b16 %v132
    %v409 = vunpack.c.l.b16 %v133
    %v410 = vunpack.c.h.b16 %v133
    %v411 = vunpack.c.l.b16 %v134
    %v412 = vunpack.c.h.b16 %v134
    %v413 = vunpack.c.l.b16 %v135
    %v414 = vunpack.c.h.b16 %v135
    %v415 = vunpack.c.l.b16 %v136
    %v416 = vunpack.c.h.b16 %v136
    %v417 = vunpack.c.l.b16 %v137
    %v418 = vunpack.c.h.b16 %v137
    %v419 = vunpack.c.l.b16 %v138
    %v420 = vunpack.c.h.b16 %v138
    %v421 = vunpack.c.l.b16 %v139
    %v422 = vunpack.c.h.b16 %v139
    %v423 = vunpack.c.l.b16 %v140
    %v424 = vunpack.c.h.b16 %v140
    %v425 = vunpack.c.l.b16 %v141
    %v426 = vunpack.c.h.b16 %v141
    %v427 = vunpack.c.l.b16 %v142
    %v428 = vunpack.c.h.b16 %v142
    %v429 = vunpack.c.l.b16 %v143
    %v430 = vunpack.c.h.b16 %v143
    %v431 = vunpack.c.l.b16 %v144
    %v432 = vunpack.c.h.b16 %v144
    %v433 = vunpack.c.l.b16 %v145
    %v434 = vunpack.c.h.b16 %v145
    %v435 = vunpack.c.l.b16 %v146
    %v436 = vunpack.c.h.b16 %v146
    %v437 = vunpack.c.l.b16 %v147
    %v438 = vunpack.c.h.b16 %v147
    %v439 = vunpack.c.l.b16 %v148
    %v440 = vunpack.c.h.b16 %v148
    %v441 = vunpack.c.l.b16 %v149
    %v442 = vunpack.c.h.b16 %v149
    %v443 = vunpack.c.l.b16 %v150
    %v444 = vunpack.c.h.b16 %v150
    %v445 = vunpack.c.l.b16 %v151
    %v446 = vunpack.c.h.b16 %v151
    %v447 = vunpack.c.l.b16 %v152
    %v448 = vunpack.c.h.b16 %v152
    %v449 = vunpack.c.l.b16 %v153
    %v450 = vunpack.c.h.b16 %v153
    %v451 = vunpack.c.l.b16 %v154
    %v452 = vunpack.c.h.b16 %v154
    %v453 = vunpack.c.l.b16 %v155
    %v454 = vunpack.c.h.b16 %v155
    %v455 = vunpack.c.l.b16 %v156
    %v456 = vunpack.c.h.b16 %v156
    %v457 = vunpack.c.l.b16 %v157
    %v458 = vunpack.c.h.b16 %v157
    %v459 = vunpack.c.l.b16 %v158
    %v460 = vunpack.c.h.b16 %v158
    %v461 = vunpack.c.l.b16 %v159
    %v462 = vunpack.c.h.b16 %v159
    %v463 = vunpack.c.l.b16 %v160
    %v464 = vunpack.c.h.b16 %v160
    %v465 = vunpack.c.l.b16 %v161
    %v466 = vunpack.c.h.b16 %v161
    %v467 = vunpack.c.l.b16 %v162
    %v468 = vunpack.c.h.b16 %v162
    %v469 = vunpack.c.l.b16 %v163
    %v470 = vunpack.c.h.b16 %v163
    %v471 = vunpack.c.l.b16 %v164
    %v472 = vunpack.c.h.b16 %v164
    %v473 = vunpack.c.l.b16 %v165
    %v474 = vunpack.c.h.b16 %v165
    %v475 = vunpack.c.l.b16 %v166
    %v476 = vunpack.c.h.b16 %v166
    %v477 = vunpack.c.l.b16 %v167
    %v478 = vunpack.c.h.b16 %v167
    %v479 = vunpack.c.l.b16 %v168
    %v480 = vunpack.c.h.b16 %v168
    %v481 = vunpack.c.l.b16 %v169
    %v482 = vunpack.c.h.b16 %v169
    %v483 = vunpack.c.l.b16 %v170
    %v484 = vunpack.c.h.b16 %v170
    %v485 = vunpack.c.l.b16 %v171
    %v486 = vunpack.c.h.b16 %v171
    %v487 = vunpack.c.l.b16 %v172
    %v488 = vunpack.c.h.b16 %v172
    %v489 = vunpack.c.l.b16 %v173
    %v490 = vunpack.c.h.b16 %v173
    %v491 = vunpack.c.l.b16 %v174
    %v492 = vunpack.c.h.b16 %v174
    %v493 = vpack.c.b16 %v303, %v301
    %v494 = vpack.c.b16 %v304, %v302
    %v495 = vpack.c.b16 %v307, %v305
    %v496 = vpack.c.b16 %v308, %v306
    %v497 = vpack.c.b16 %v311, %v309
    %v498 = vpack.c.b16 %v312, %v310
    %v499 = vpack.c.b16 %v315, %v313
    %v500 = vpack.c.b16 %v316, %v314
    %v501 = vpack.c.b16 %v319, %v317
    %v502 = vpack.c.b16 %v320, %v318
    %v503 = vpack.c.b16 %v323, %v321
    %v504 = vpack.c.b16 %v324, %v322
    %v505 = vpack.c.b16 %v327, %v325
    %v506 = vpack.c.b16 %v328, %v326
    %v507 = vpack.c.b16 %v331, %v329
    %v508 = vpack.c.b16 %v332, %v330
    %v509 = vpack.c.b16 %v335, %v333
    %v510 = vpack.c.b16 %v336, %v334
    %v511 = vpack.c.b16 %v339, %v337
    %v512 = vpack.c.b16 %v340, %v338
    %v513 = vpack.c.b16 %v343, %v341
    %v514 = vpack.c.b16 %v344, %v342
    %v515 = vpack.c.b16 %v347, %v345
    %v516 = vpack.c.b16 %v348, %v346
    %v517 = vpack.c.b16 %v351, %v349
    %v518 = vpack.c.b16 %v352, %v350
    %v519 = vpack.c.b16 %v355, %v353
    %v520 = vpack.c.b16 %v356, %v354
    %v521 = vpack.c.b16 %v359, %v357
    %v522 = vpack.c.b16 %v360, %v358
    %v523 = vpack.c.b16 %v363, %v361
    %v524 = vpack.c.b16 %v364, %v362
    %v525 = vpack.c.b16 %v367, %v365
    %v526 = vpack.c.b16 %v368, %v366
    %v527 = vpack.c.b16 %v371, %v369
    %v528 = vpack.c.b16 %v372, %v370
    %v529 = vpack.c.b16 %v375, %v373
    %v530 = vpack.c.b16 %v376, %v374
    %v531 = vpack.c.b16 %v379, %v377
    %v532 = vpack.c.b16 %v380, %v378
    %v533 = vpack.c.b16 %v383, %v381
    %v534 = vpack.c.b16 %v384, %v382
    %v535 = vpack.c.b16 %v387, %v385
    %v536 = vpack.c.b16 %v388, %v386
    %v537 = vpack.c.b16 %v391, %v389
    %v538 = vpack.c.b16 %v392, %v390
    %v539 = vpack.c.b16 %v395, %v393
    %v540 = vpack.c.b16 %v396, %v394
    %v541 = vpack.c.b16 %v399, %v397
    %v542 = vpack.c.b16 %v400, %v398
    %v543 = vpack.c.b16 %v403, %v401
    %v544 = vpack.c.b16 %v404, %v402
    %v545 = vpack.c.b16 %v407, %v405
    %v546 = vpack.c.b16 %v408, %v406
    %v547 = vpack.c.b16 %v411, %v409
    %v548 = vpack.c.b16 %v412, %v410
    %v549 = vpack.c.b16 %v415, %v413
    %v550 = vpack.c.b16 %v416, %v414
    %v551 = vpack.c.b16 %v419, %v417
    %v552 = vpack.c.b16 %v420, %v418
    %v553 = vpack.c.b16 %v423, %v421
    %v554 = vpack.c.b16 %v424, %v422
    %v555 = vpack.c.b16 %v427, %v425
    %v556 = vpack.c.b16 %v428, %v426
    %v557 = vpack.c.b16 %v431, %v429
    %v558 = vpack.c.b16 %v432, %v430
    %v559 = vpack.c.b16 %v435, %v433
    %v560 = vpack.c.b16 %v436, %v434
    %v561 = vpack.c.b16 %v439, %v437
    %v562 = vpack.c.b16 %v440, %v438
    %v563 = vpack.c.b16 %v443, %v441
    %v564 = vpack.c.b16 %v444, %v442
    %v565 = vpack.c.b16 %v447, %v445
    %v566 = vpack.c.b16 %v448, %v446
    %v567 = vpack.c.b16 %v451, %v449
    %v568 = vpack.c.b16 %v452, %v450
    %v569 = vpack.c.b16 %v455, %v453
    %v570 = vpack.c.b16 %v456, %v454
    %v571 = vpack.c.b16 %v459, %v457
    %v572 = vpack.c.b16 %v460, %v458
    %v573 = vpack.c.b16 %v463, %v461
    %v574 = vpack.c.b16 %v464, %v462
    %v575 = vpack.c.b16 %v467, %v465
    %v576 = vpack.c.b16 %v468, %v466
    %v577 = vpack.c.b16 %v471, %v469
    %v578 = vpack.c.b16 %v472, %v470
    %v579 = vpack.c.b16 %v475, %v473
    %v580 = vpack.c.b16 %v476, %v474
    %v581 = vpack.c.b16 %v479, %v477
    %v582 = vpack.c.b16 %v480, %v478
    %v583 = vpack.c.b16 %v483, %v481
    %v584 = vpack.c.b16 %v484, %v482
    %v585 = vpack.c.b16 %v487, %v485
    %v586 = vpack.c.b16 %v488, %v486
    %v587 = vpack.c.b16 %v491, %v489
    %v588 = vpack.c.b16 %v492, %v490
    %685 = vmatprep.subr.bf16.mxu0 %v494
    %686 = vmatpush1.bf16.msra.mxu0 %v493
    %687 = vmatprep.subr.bf16.mxu0 %v496
    %688 = vmatpush1.bf16.msra.mxu0 %v495
    %689 = vmatprep.subr.bf16.mxu0 %v498
    %690 = vmatpush1.bf16.msra.mxu0 %v497
    %691 = vmatprep.subr.bf16.mxu0 %v500
    %692 = vmatpush1.bf16.msra.mxu0 %v499
    %693 = vmatprep.subr.bf16.mxu0 %v502
    %694 = vmatpush1.bf16.msra.mxu0 %v501
    %695 = vmatprep.subr.bf16.mxu0 %v504
    %696 = vmatpush1.bf16.msra.mxu0 %v503
    %697 = vmatprep.subr.bf16.mxu0 %v506
    %698 = vmatpush1.bf16.msra.mxu0 %v505
    %699 = vmatprep.subr.bf16.mxu0 %v508
    %700 = vmatpush1.bf16.msra.mxu0 %v507
    %701 = vmatprep.subr.bf16.mxu0 %v510
    %702 = vmatpush1.bf16.msra.mxu0 %v509
    %703 = vmatprep.subr.bf16.mxu0 %v512
    %704 = vmatpush1.bf16.msra.mxu0 %v511
    %705 = vmatprep.subr.bf16.mxu0 %v514
    %706 = vmatpush1.bf16.msra.mxu0 %v513
    %707 = vmatprep.subr.bf16.mxu0 %v516
    %708 = vmatpush1.bf16.msra.mxu0 %v515
    %709 = vmatprep.subr.bf16.mxu0 %v518
    %710 = vmatpush1.bf16.msra.mxu0 %v517
    %711 = vmatprep.subr.bf16.mxu0 %v520
    %712 = vmatpush1.bf16.msra.mxu0 %v519
    %713 = vmatprep.subr.bf16.mxu0 %v522
    %714 = vmatpush1.bf16.msra.mxu0 %v521
    %715 = vmatprep.subr.bf16.mxu0 %v524
    %716 = vmatpush1.bf16.msra.mxu0 %v523
    %717 = vmatprep.mubr.bf16.mxu0 %v194
    %718 = vmatmul.mubr.bf16.gmra.mrb[0].mxu0 %v193
    %v719 = vpop.f32.mrb[0].mxu0
    %v720 = vadd.f32 0.0, %v719
    %v721 = vpop.f32.mrb[0].mxu0
    %v722 = vadd.f32 0.0, %v721
    %v723 = vpop.f32.mrb[0].mxu0
    %v724 = vadd.f32 0.0, %v723
    %v725 = vpop.f32.mrb[0].mxu0
    %v726 = vadd.f32 0.0, %v725
    %727 = vdwg.mxu0
    %728 = vmatprep.subr.bf16.mxu0 %v526
    %729 = vmatpush1.bf16.msra.mxu0 %v525
    %730 = vmatprep.subr.bf16.mxu0 %v528
    %731 = vmatpush1.bf16.msra.mxu0 %v527
    %732 = vmatprep.subr.bf16.mxu0 %v530
    %733 = vmatpush1.bf16.msra.mxu0 %v529
    %734 = vmatprep.subr.bf16.mxu0 %v532
    %735 = vmatpush1.bf16.msra.mxu0 %v531
    %736 = vmatprep.subr.bf16.mxu0 %v534
    %737 = vmatpush1.bf16.msra.mxu0 %v533
    %738 = vmatprep.subr.bf16.mxu0 %v536
    %739 = vmatpush1.bf16.msra.mxu0 %v535
    %740 = vmatprep.subr.bf16.mxu0 %v538
    %741 = vmatpush1.bf16.msra.mxu0 %v537
    %742 = vmatprep.subr.bf16.mxu0 %v540
    %743 = vmatpush1.bf16.msra.mxu0 %v539
    %744 = vmatprep.subr.bf16.mxu0 %v542
    %745 = vmatpush1.bf16.msra.mxu0 %v541
    %746 = vmatprep.subr.bf16.mxu0 %v544
    %747 = vmatpush1.bf16.msra.mxu0 %v543
    %748 = vmatprep.subr.bf16.mxu0 %v546
    %749 = vmatpush1.bf16.msra.mxu0 %v545
    %750 = vmatprep.subr.bf16.mxu0 %v548
    %751 = vmatpush1.bf16.msra.mxu0 %v547
    %752 = vmatprep.subr.bf16.mxu0 %v550
    %753 = vmatpush1.bf16.msra.mxu0 %v549
    %754 = vmatprep.subr.bf16.mxu0 %v552
    %755 = vmatpush1.bf16.msra.mxu0 %v551
    %756 = vmatprep.subr.bf16.mxu0 %v554
    %757 = vmatpush1.bf16.msra.mxu0 %v553
    %758 = vmatprep.subr.bf16.mxu0 %v556
    %759 = vmatpush1.bf16.msra.mxu0 %v555
    %760 = vmatprep.mubr.bf16.mxu0 %v196
    %761 = vmatmul.mubr.bf16.gmra.mrb[0].mxu0 %v195
    %v762 = vpop.f32.mrb[0].mxu0
    %v763 = vadd.f32 %v720, %v762
    %v764 = vpop.f32.mrb[0].mxu0
    %v765 = vadd.f32 %v722, %v764
    %v766 = vpop.f32.mrb[0].mxu0
    %v767 = vadd.f32 %v724, %v766
    %v768 = vpop.f32.mrb[0].mxu0
    %v769 = vadd.f32 %v726, %v768
    %770 = vdwg.mxu0
    %771 = vmatprep.subr.bf16.mxu0 %v558
    %772 = vmatpush1.bf16.msra.mxu0 %v557
    %773 = vmatprep.subr.bf16.mxu0 %v560
    %774 = vmatpush1.bf16.msra.mxu0 %v559
    %775 = vmatprep.subr.bf16.mxu0 %v562
    %776 = vmatpush1.bf16.msra.mxu0 %v561
    %777 = vmatprep.subr.bf16.mxu0 %v564
    %778 = vmatpush1.bf16.msra.mxu0 %v563
    %779 = vmatprep.subr.bf16.mxu0 %v566
    %780 = vmatpush1.bf16.msra.mxu0 %v565
    %781 = vmatprep.subr.bf16.mxu0 %v568
    %782 = vmatpush1.bf16.msra.mxu0 %v567
    %783 = vmatprep.subr.bf16.mxu0 %v570
    %784 = vmatpush1.bf16.msra.mxu0 %v569
    %785 = vmatprep.subr.bf16.mxu0 %v572
    %786 = vmatpush1.bf16.msra.mxu0 %v571
    %787 = vmatprep.subr.bf16.mxu0 %v574
    %788 = vmatpush1.bf16.msra.mxu0 %v573
    %789 = vmatprep.subr.bf16.mxu0 %v576
    %790 = vmatpush1.bf16.msra.mxu0 %v575
    %791 = vmatprep.subr.bf16.mxu0 %v578
    %792 = vmatpush1.bf16.msra.mxu0 %v577
    %793 = vmatprep.subr.bf16.mxu0 %v580
    %794 = vmatpush1.bf16.msra.mxu0 %v579
    %795 = vmatprep.subr.bf16.mxu0 %v582
    %796 = vmatpush1.bf16.msra.mxu0 %v581
    %797 = vmatprep.subr.bf16.mxu0 %v584
    %798 = vmatpush1.bf16.msra.mxu0 %v583
    %799 = vmatprep.subr.bf16.mxu0 %v586
    %800 = vmatpush1.bf16.msra.mxu0 %v585
    %801 = vmatprep.subr.bf16.mxu0 %v588
    %802 = vmatpush1.bf16.msra.mxu0 %v587
    %803 = vmatprep.mubr.bf16.mxu0 %v198
    %804 = vmatmul.mubr.bf16.gmra.mrb[0].mxu0 %v197
    %v805 = vpop.f32.mrb[0].mxu0
    %v806 = vadd.f32 %v763, %v805
    %v807 = vpop.f32.mrb[0].mxu0
    %v808 = vadd.f32 %v765, %v807
    %v809 = vpop.f32.mrb[0].mxu0
    %v810 = vadd.f32 %v767, %v809
    %v811 = vpop.f32.mrb[0].mxu0
    %v812 = vadd.f32 %v769, %v811
    %813 = vdwg.mxu0
    %v814 = vadd.f32 %v69, %v806
    %v815 = vadd.f32 %v70, %v808
    %v816 = vadd.f32 %v71, %v810
    %v817 = vadd.f32 %v72, %v812
    %818 = vst [vmem:[#allocation2] sm:$0xff] %v814
    %819 = vst [vmem:[#allocation2 + $0x8] sm:$0xff] %v815
    %820 = vst [vmem:[#allocation2 + $0x10] sm:$0xff] %v816
    %821 = vst [vmem:[#allocation2 + $0x18] sm:$0xff] %v817
    // Predicated region
    $region34: #{tpu_custom_call.1} parent=1 // pred_check
      %p822 = pneg %p61
    $region35: #{tpu_custom_call.1} parent=1 // pred_check_branch
      %824 = sbr.rel (%p822) target = $region37
    $region36: #{tpu_custom_call.1} parent=1 // pred_region
      %v825 = vld [vmem:[#allocation2] sm:$0xff]
      %v826 = vld [vmem:[#allocation2 + $0x8] sm:$0xff]
      %v827 = vld [vmem:[#allocation2 + $0x10] sm:$0xff]
      %v828 = vld [vmem:[#allocation2 + $0x18] sm:$0xff]
      %v829 = vmul.f32 %v825, %v825
      %v830 = vmul.f32 %v826, %v826
      %v831 = vmul.f32 %v827, %v827
      %v832 = vmul.f32 %v828, %v828
      %v833 = vadd.f32 %v829, %v830
      %834 = vadd.xlane.f32.xlu0 %v833
      %v835 = vpop.xlane.xlu0 %834
      %v836 = vadd.f32 %v831, %v832
      %837 = vadd.xlane.f32.xlu0 %v836
      %v838 = vpop.xlane.xlu0 %837
      %v839 = vmax.f32 %v835, 1e-30
      %v840 = vmax.f32 %v838, 1e-30
      %v841 = vrsqrt.pop %v839
      %v842 = vrsqrt.pop %v840
      %v843 = vmul.f32 %v825, %v841
      %v844 = vmul.f32 %v826, %v841
      %v845 = vmul.f32 %v827, %v842
      %v846 = vmul.f32 %v828, %v842
      %s847 = sld [smem:[#allocation3]]
      %v848 = vpack.c.bf16 %v845, %v843
      %v849 = vpack.c.bf16 %v846, %v844
      %v850 = vld [vmem:[#allocation9] sm:$0xff]
      %v851 = vld [vmem:[#allocation9 + $0x8] sm:$0xff]
      %v852 = vld [vmem:[#allocation9 + $0x10] sm:$0xff]
      %v853 = vld [vmem:[#allocation9 + $0x18] sm:$0xff]
      %v854 = vld [vmem:[#allocation9 + $0x20] sm:$0xff]
      %v855 = vld [vmem:[#allocation9 + $0x28] sm:$0xff]
      %v856 = vld [vmem:[#allocation9 + $0x30] sm:$0xff]
      %v857 = vld [vmem:[#allocation9 + $0x38] sm:$0xff]
      %v858 = vld [vmem:[#allocation9 + $0x40] sm:$0xff]
      %v859 = vld [vmem:[#allocation9 + $0x48] sm:$0xff]
      %v860 = vld [vmem:[#allocation9 + $0x50] sm:$0xff]
      %v861 = vld [vmem:[#allocation9 + $0x58] sm:$0xff]
      %v862 = vld [vmem:[#allocation9 + $0x60] sm:$0xff]
      %v863 = vld [vmem:[#allocation9 + $0x68] sm:$0xff]
      %v864 = vld [vmem:[#allocation9 + $0x70] sm:$0xff]
      %v865 = vld [vmem:[#allocation9 + $0x78] sm:$0xff]
      %v882 = vunpack.c.l.b16 %v850
      %v883 = vunpack.c.h.b16 %v850
      %v884 = vunpack.c.l.b16 %v851
      %v885 = vunpack.c.h.b16 %v851
      %v886 = vunpack.c.l.b16 %v852
      %v887 = vunpack.c.h.b16 %v852
      %v888 = vunpack.c.l.b16 %v853
      %v889 = vunpack.c.h.b16 %v853
      %v890 = vunpack.c.l.b16 %v854
      %v891 = vunpack.c.h.b16 %v854
      %v892 = vunpack.c.l.b16 %v855
      %v893 = vunpack.c.h.b16 %v855
      %v894 = vunpack.c.l.b16 %v856
      %v895 = vunpack.c.h.b16 %v856
      %v896 = vunpack.c.l.b16 %v857
      %v897 = vunpack.c.h.b16 %v857
      %v898 = vunpack.c.l.b16 %v858
      %v899 = vunpack.c.h.b16 %v858
      %v900 = vunpack.c.l.b16 %v859
      %v901 = vunpack.c.h.b16 %v859
      %v902 = vunpack.c.l.b16 %v860
      %v903 = vunpack.c.h.b16 %v860
      %v904 = vunpack.c.l.b16 %v861
      %v905 = vunpack.c.h.b16 %v861
      %v906 = vunpack.c.l.b16 %v862
      %v907 = vunpack.c.h.b16 %v862
      %v908 = vunpack.c.l.b16 %v863
      %v909 = vunpack.c.h.b16 %v863
      %v910 = vunpack.c.l.b16 %v864
      %v911 = vunpack.c.h.b16 %v864
      %v912 = vunpack.c.l.b16 %v865
      %v913 = vunpack.c.h.b16 %v865
      %v914 = vpack.c.b16 %v884, %v882
      %v915 = vpack.c.b16 %v885, %v883
      %v916 = vpack.c.b16 %v888, %v886
      %v917 = vpack.c.b16 %v889, %v887
      %v918 = vpack.c.b16 %v892, %v890
      %v919 = vpack.c.b16 %v893, %v891
      %v920 = vpack.c.b16 %v896, %v894
      %v921 = vpack.c.b16 %v897, %v895
      %v922 = vpack.c.b16 %v900, %v898
      %v923 = vpack.c.b16 %v901, %v899
      %v924 = vpack.c.b16 %v904, %v902
      %v925 = vpack.c.b16 %v905, %v903
      %v926 = vpack.c.b16 %v908, %v906
      %v927 = vpack.c.b16 %v909, %v907
      %v928 = vpack.c.b16 %v912, %v910
      %v929 = vpack.c.b16 %v913, %v911
      %946 = vmatprep.subr.bf16.mxu0 %v915
      %947 = vmatpush1.bf16.xpose.msra.mxu0 %v914
      %948 = vmatprep.subr.bf16.mxu0 %v917
      %949 = vmatpush1.bf16.xpose.msra.mxu0 %v916
      %950 = vmatprep.subr.bf16.mxu0 %v919
      %951 = vmatpush1.bf16.xpose.msra.mxu0 %v918
      %952 = vmatprep.subr.bf16.mxu0 %v921
      %953 = vmatpush1.bf16.xpose.msra.mxu0 %v920
      %954 = vmatprep.subr.bf16.mxu0 %v923
      %955 = vmatpush1.bf16.xpose.msra.mxu0 %v922
      %956 = vmatprep.subr.bf16.mxu0 %v925
      %957 = vmatpush1.bf16.xpose.msra.mxu0 %v924
      %958 = vmatprep.subr.bf16.mxu0 %v927
      %959 = vmatpush1.bf16.xpose.msra.mxu0 %v926
      %960 = vmatprep.subr.bf16.mxu0 %v929
      %961 = vmatpush1.bf16.xpose.msra.mxu0 %v928
      %962 = vmatprep.subr.bf16.mxu0 0
      %963 = vmatpush1.bf16.xpose.msra.mxu0 0
      %964 = vmatprep.subr.bf16.mxu0 0
      %965 = vmatpush1.bf16.xpose.msra.mxu0 0
      %966 = vmatprep.subr.bf16.mxu0 0
      %967 = vmatpush1.bf16.xpose.msra.mxu0 0
      %968 = vmatprep.subr.bf16.mxu0 0
      %969 = vmatpush1.bf16.xpose.msra.mxu0 0
      %970 = vmatprep.subr.bf16.mxu0 0
      %971 = vmatpush1.bf16.xpose.msra.mxu0 0
      %972 = vmatprep.subr.bf16.mxu0 0
      %973 = vmatpush1.bf16.xpose.msra.mxu0 0
      %974 = vmatprep.subr.bf16.mxu0 0
      %975 = vmatpush1.bf16.xpose.msra.mxu0 0
      %976 = vmatprep.subr.bf16.mxu0 0
      %977 = vmatpush1.bf16.xpose.msra.mxu0 0
      %978 = vmatprep.mubr.bf16.mxu0 %v849
      %979 = vmatmul.mubr.bf16.gmra.mrb[0].mxu0 %v848
      %v980 = vpop.f32.mrb[0].mxu0
      %v981 = vadd.f32 0.0, %v980
      %v982 = vpop.f32.mrb[0].mxu0
      %v983 = vpop.f32.mrb[0].mxu0
      %v984 = vadd.f32 0.0, %v983
      %v985 = vpop.f32.mrb[0].mxu0
      %986 = vdwg.mxu0
      %v987 = vstv %s847
      %v988 = vmul.f32 %v987, %v981
      %v989 = vmul.f32 %v987, %v984
      %v990 = vlaneseq
      %v991 = vand.u32 %v990, 127
      %vm992 = vcmp.lt.s32.totalorder %v991, 8
      %v993 = vsel %vm992, %v988, -inf
      %v994 = vsel %vm992, %v989, -inf
      %995 = vmax.xlane.f32.xlu0 %v993
      %v996 = vpop.xlane.xlu0 %995
      %997 = vmax.xlane.f32.xlu0 %v994
      %v998 = vpop.xlane.xlu0 %997
      %v999 = vsub.f32 %v993, %v996
      %v1000 = vsub.f32 %v994, %v998
      %v1001 = vmul.f32 %v999, 1.442695
      %v1002 = vpow.pop %v1001
      %v1003 = vmul.f32 %v1000, 1.442695
      %v1004 = vpow.pop %v1003
      %1005 = vadd.xlane.f32.xlu0 %v1002
      %v1006 = vpop.xlane.xlu0 %1005
      %1007 = vadd.xlane.f32.xlu0 %v1004
      %v1008 = vpop.xlane.xlu0 %1007
      %v1009 = vrcp.pop %v1006
      %v1010 = vmul.f32 %v1002, %v1009
      %v1011 = vrcp.pop %v1008
      %v1012 = vmul.f32 %v1004, %v1011
      %1013 = vst [vmem:[#allocation10] sm:$0xff] %v1010
      %1014 = vst [vmem:[#allocation10 + $0x8] sm:$0xff] %v1012
    $region37: #{tpu_custom_call.1} parent=1 // pred_fallthru
      _
    // Predicated region
    $region38: #{tpu_custom_call.1} parent=1 // pred_check
      _
    $region39: #{tpu_custom_call.1} parent=1 // pred_check_branch
      %1016 = sbr.rel (0) target = $region41
    $region40: #{tpu_custom_call.1} parent=1 // pred_region
      %s1018 = ssub.s32 256, 256
      %1019 = vsyncadd [#allocation6], %s1018
      %s1020 = sshll.u32 [#allocation10], 4
      %s1021 = int_to_ptr.vmem [resolvable:$true] %s1020
      %1026 = dma.vmem_to_hbm [thread:$0]  %s1021, 256, %s4, [#allocation6], 128, 128, 8
    $region41: #{tpu_custom_call.1} parent=1 // pred_fallthru
      _
    // Predicated region
    $region42: #{tpu_custom_call.1} parent=1 // pred_check
      _
    $region43: #{tpu_custom_call.1} parent=1 // pred_check_branch
      %1028 = sbr.rel (0) target = $region45
    $region44: #{tpu_custom_call.1} parent=1 // pred_region
      %1029 = dma.done [#allocation6], 256
    $region45: #{tpu_custom_call.1} parent=1 // pred_fallthru
      _
    %1030 = vsyncpa [#allocation5], 1
    %1031 = vsyncpa [#allocation8], 1
    %1032 = vsyncpa [#allocation6], 1

</llo_original>
